<compile_context>
chip_gen: v6e
topology: v6e:2x2x1
jax: 0.10.0
libtpu: 0.0.40
codegen_flags: <defaults>
</compile_context>

<pallas_src>
import math

import jax
import jax.numpy as jnp
from jax.experimental import pallas as pl
from jax.experimental.pallas import tpu as pltpu


VW = 128          # lane-dense output / value width
NEG_BIG = -1e30   # finite "minus infinity" for masking


def _round_up(x, m):
    return ((x + m - 1) // m) * m


# ----------------------------------------------------------------------------
# Pallas kernel: fused dual-direction simplified attention + confidence logits
# with online softmax over KV tiles.
# Grid: (direction, batch, q_tile, kv_tile); kv_tile is the reduction axis.
# ----------------------------------------------------------------------------
def _corr_decoder_kernel(klens_ref,                      # scalar prefetch (SMEM), (2, B) int32
                         qf_ref, kf_ref, v_ref,          # inputs
                         wqc_ref, bqc_ref, wk_ref, bk_ref,
                         out_ref,                        # output (1, 1, TQ, 128)
                         projq_scr, m_scr, l_scr, acc_scr):
    dir_idx = pl.program_id(0)
    b = pl.program_id(1)
    ki = pl.program_id(3)
    n_kv = pl.num_programs(3)

    D = wk_ref.shape[0]          # embedding dim (multiple of 128)
    TS = kf_ref.shape[2]         # kv tile size

    # ---- per-(dir, b, q_tile) init: fused query projection + accumulator reset ----
    @pl.when(ki == 0)
    def _():
        qf = qf_ref[0, 0]                                           # (TQ, D)
        # proj_q[:, 0:D]   = q_proj(qf)/sqrt(D)   (scale folded into W/b)
        # proj_q[:, D+3]   = conf_logits_decoder(qf)
        projq_scr[...] = (jnp.dot(qf, wqc_ref[...],
                                  preferred_element_type=jnp.float32)
                          + bqc_ref[...])
        m_scr[...] = jnp.full_like(m_scr, NEG_BIG)
        l_scr[...] = jnp.zeros_like(l_scr)
        acc_scr[...] = jnp.zeros_like(acc_scr)

    q = projq_scr[:, :D]                                            # (TQ, D)

    # ---- key projection for this KV tile ----
    kf = kf_ref[0, 0]                                               # (TS, D)
    k = (jnp.dot(kf, wk_ref[...], preferred_element_type=jnp.float32)
         + bk_ref[...])                                             # (TS, D)

    # ---- scores: contract last dims directly (no explicit transpose) ----
    s = jax.lax.dot_general(q, k, (((1,), (1,)), ((), ())),
                            preferred_element_type=jnp.float32)     # (TQ, TS)

    # ---- key-padding mask from scalar-prefetched lengths ----
    klen = klens_ref[dir_idx, b]
    col = jax.lax.broadcasted_iota(jnp.int32, (1, TS), 1) + ki * TS
    s = s + jnp.where(col < klen, jnp.float32(0.0), jnp.float32(NEG_BIG))

    # ---- online softmax update ----
    m_prev = m_scr[...]                                             # (TQ, 1)
    m_new = jnp.maximum(m_prev, jnp.max(s, axis=-1, keepdims=True))
    alpha = jnp.exp(m_prev - m_new)
    p = jnp.exp(s - m_new)                                          # (TQ, TS)
    l_scr[...] = alpha * l_scr[...] + jnp.sum(p, axis=-1, keepdims=True)
    acc_scr[...] = alpha * acc_scr[...] + jnp.dot(
        p, v_ref[0, 0], preferred_element_type=jnp.float32)         # (TQ, 128)
    m_scr[...] = m_new

    # ---- finalize: normalize, add conf-logit lane, one lane-dense store ----
    @pl.when(ki == n_kv - 1)
    def _():
        inv_l = pl.reciprocal(l_scr[...], approx=True)              # EUP slot
        # acc cols 3:128 are zero (values padded); conf window has ovl at col 3, zeros elsewhere.
        out = acc_scr[...] * inv_l + projq_scr[:, D:]
        out_ref[0, 0] = out.astype(out_ref.dtype)


# ----------------------------------------------------------------------------
# Wrapper: pack both directions into one call, build fused weights, unpad.
# ----------------------------------------------------------------------------
def _pad_list(xyz_list):
    """List of (N_b, 3) -> (B, N_max, 3) f32, bool mask (B, N_max) True at padding, lens."""
    lens = [int(x.shape[0]) for x in xyz_list]
    n_max = max(lens)
    padded = jnp.stack(
        [jnp.pad(x, ((0, n_max - x.shape[0]), (0, 0))) for x in xyz_list], axis=0)
    mask = jnp.stack([jnp.arange(n_max) >= l for l in lens], axis=0)
    return padded.astype(jnp.float32), mask, lens


def _pad_axis0(x, n):
    return jnp.pad(x, ((0, n - x.shape[0]),) + ((0, 0),) * (x.ndim - 1))


def correspondence_decoder_forward(params, src_feats_padded, tgt_feats_padded,
                                   src_xyz, tgt_xyz, *, tile=None):
    """PyTorch-layout args:
        src_feats_padded: (N_src, B, D)   tgt_feats_padded: (N_tgt, B, D)
        src_xyz / tgt_xyz: lists of (N_b, 3)
    Returns (src_corr_list, tgt_corr_list, src_overlap_list, tgt_overlap_list)."""
    D = params["wq"].shape[0]
    assert D % 128 == 0, "kernel assumes d_embed is a multiple of 128 (regtr default is 256)"
    N_src, B, _ = src_feats_padded.shape
    N_tgt = tgt_feats_padded.shape[0]

    src_xyz_b, _, src_lens = _pad_list(src_xyz)      # (B, N_src, 3)
    tgt_xyz_b, _, tgt_lens = _pad_list(tgt_xyz)      # (B, N_tgt, 3)

    n_max = max(N_src, N_tgt)
    if tile is None:
        tile = min(256, _round_up(n_max, 8))
    assert tile % 8 == 0
    Np = _round_up(n_max, tile)

    # Stacked batch-major features: feats_all[0] = src, feats_all[1] = tgt   (2, B, Np, D)
    src_f = jnp.transpose(_pad_axis0(src_feats_padded.astype(jnp.float32), Np), (1, 0, 2))
    tgt_f = jnp.transpose(_pad_axis0(tgt_feats_padded.astype(jnp.float32), Np), (1, 0, 2))
    feats_all = jnp.stack([src_f, tgt_f], axis=0)

    # Lane-dense (width-128) value arrays: xyz in cols 0:3, zeros elsewhere.   (2, B, Np, 128)
    src_v = jnp.zeros((B, Np, VW), jnp.float32).at[:, :N_src, :3].set(src_xyz_b)
    tgt_v = jnp.zeros((B, Np, VW), jnp.float32).at[:, :N_tgt, :3].set(tgt_xyz_b)
    v_all = jnp.stack([src_v, tgt_v], axis=0)

    # Valid KEY lengths per direction: dir 0 = src queries over tgt keys, dir 1 = the reverse.
    klens = jnp.array([tgt_lens, src_lens], dtype=jnp.int32)        # (2, B)

    # Fused query/conf weights with 1/sqrt(D) pre-folded; conf logit lands at column D+3
    # so the conf window (cols D:D+128) can be added directly to the lane-dense output tile.
    inv_sqrt_d = 1.0 / math.sqrt(float(D))
    PWQ = D + 128
    wqc = jnp.zeros((D, PWQ), jnp.float32)
    wqc = wqc.at[:, :D].set(params["wq"] * inv_sqrt_d)
    wqc = wqc.at[:, D + 3].set(params["wc"][:, 0])
    bqc = jnp.zeros((1, PWQ), jnp.float32)
    bqc = bqc.at[0, :D].set(params["bq"][0] * inv_sqrt_d)
    bqc = bqc.at[0, D + 3].set(params["bc"][0, 0])
    wk = params["wk"].astype(jnp.float32)
    bk = params["bk"].astype(jnp.float32)

    TQ = TS = tile
    grid = (2, B, Np // TQ, Np // TS)

    out = pl.pallas_call(
        _corr_decoder_kernel,
        out_shape=jax.ShapeDtypeStruct((2, B, Np, VW), jnp.float32),
        grid_spec=pltpu.PrefetchScalarGridSpec(
            num_scalar_prefetch=1,
            grid=grid,
            in_specs=[
                # query features: own direction
                pl.BlockSpec((1, 1, TQ, D), lambda d, b, qi, ki, kl: (d, b, qi, 0)),
                # key features: opposite direction
                pl.BlockSpec((1, 1, TS, D), lambda d, b, qi, ki, kl: (1 - d, b, ki, 0)),
                # values (xyz padded to 128 lanes): opposite direction
                pl.BlockSpec((1, 1, TS, VW), lambda d, b, qi, ki, kl: (1 - d, b, ki, 0)),
                # constant weights, resident in VMEM across the whole grid
                pl.BlockSpec((D, PWQ), lambda d, b, qi, ki, kl: (0, 0)),
                pl.BlockSpec((1, PWQ), lambda d, b, qi, ki, kl: (0, 0)),
                pl.BlockSpec((D, D),   lambda d, b, qi, ki, kl: (0, 0)),
                pl.BlockSpec((1, D),   lambda d, b, qi, ki, kl: (0, 0)),
            ],
            out_specs=pl.BlockSpec((1, 1, TQ, VW),
                                   lambda d, b, qi, ki, kl: (d, b, qi, 0)),
            scratch_shapes=[
                pltpu.VMEM((TQ, PWQ), jnp.float32),   # fused query projection (q | conf window)
                pltpu.VMEM((TQ, 1), jnp.float32),     # running max
                pltpu.VMEM((TQ, 1), jnp.float32),     # running denom
                pltpu.VMEM((TQ, VW), jnp.float32),    # running weighted-value accumulator
            ],
        ),
        compiler_params=pltpu.CompilerParams(
            dimension_semantics=("parallel", "parallel", "parallel", "arbitrary")),
    )(klens, feats_all, feats_all, v_all, wqc, bqc, wk, bk)

    # Unpack lane-dense output: cols 0:3 = corr, col 3 = overlap logit.
    src_corr_list = [out[0, b, :src_lens[b], 0:3] for b in range(B)]
    tgt_corr_list = [out[1, b, :tgt_lens[b], 0:3] for b in range(B)]
    src_overlap_list = [out[0, b, :src_lens[b], 3:4] for b in range(B)]
    tgt_overlap_list = [out[1, b, :tgt_lens[b], 3:4] for b in range(B)]
    return src_corr_list, tgt_corr_list, src_overlap_list, tgt_overlap_list


# ----------------------------------------------------------------------------
# Pure-JAX reference (mirrors the PyTorch forward) for a sanity check.
# ----------------------------------------------------------------------------
def _reference_attention(params, qf_nbd, kf_nbd, val_nbe, key_mask_bs):
    d = qf_nbd.shape[-1]
    q = (jnp.einsum('qbd,de->qbe', qf_nbd, params["wq"]) + params["bq"][0]) / math.sqrt(d)
    k = jnp.einsum('sbd,de->sbe', kf_nbd, params["wk"]) + params["bk"][0]
    attn = jnp.einsum('qbd,sbd->bqs', q, k)
    attn = attn + jnp.where(key_mask_bs, -jnp.inf, 0.0)[:, None, :]
    attn = jax.nn.softmax(attn, axis=-1)
    return jnp.einsum('bqs,sbe->qbe', attn, val_nbe)   # (Q, B, E)


# ----------------------------------------------------------------------------
# Main
# ----------------------------------------------------------------------------
if __name__ == "__main__":
    key = jax.random.PRNGKey(0)
    D = 128            # d_embed (regtr uses 256; must be a multiple of 128)
    B = 2
    src_lens_in = [96, 72]
    tgt_lens_in = [88, 64]
    N_SRC, N_TGT = max(src_lens_in), max(tgt_lens_in)

    keys = jax.random.split(key, 12)

    # Weights stored as (in, out) so y = x @ W + b (matches nn.Linear semantics).
    params = {
        "wq": jax.random.normal(keys[0], (D, D), jnp.float32) * (1.0 / math.sqrt(D)),
        "bq": jax.random.normal(keys[1], (1, D), jnp.float32) * 0.01,
        "wk": jax.random.normal(keys[2], (D, D), jnp.float32) * (1.0 / math.sqrt(D)),
        "bk": jax.random.normal(keys[3], (1, D), jnp.float32) * 0.01,
        "wc": jax.random.normal(keys[4], (D, 1), jnp.float32) * (1.0 / math.sqrt(D)),
        "bc": jax.random.normal(keys[5], (1, 1), jnp.float32) * 0.01,
    }

    # Inputs in the PyTorch layout: feats (N, B, D), xyz as per-batch lists.
    src_feats_padded = jax.random.normal(keys[6], (N_SRC, B, D), jnp.float32)
    tgt_feats_padded = jax.random.normal(keys[7], (N_TGT, B, D), jnp.float32)
    src_xyz = [jax.random.normal(keys[8], (src_lens_in[0], 3), jnp.float32),
               jax.random.normal(keys[9], (src_lens_in[1], 3), jnp.float32)]
    tgt_xyz = [jax.random.normal(keys[10], (tgt_lens_in[0], 3), jnp.float32),
               jax.random.normal(keys[11], (tgt_lens_in[1], 3), jnp.float32)]

    out = correspondence_decoder_forward(params, src_feats_padded, tgt_feats_padded,
                                         src_xyz, tgt_xyz, tile=32)
    out = jax.tree_util.tree_map(jax.block_until_ready, out)
    src_corr_list, tgt_corr_list, src_overlap_list, tgt_overlap_list = out

    # ---- sanity check against a pure-JAX reference of the PyTorch forward ----
    src_xyz_b, src_mask, _ = _pad_list(src_xyz)
    tgt_xyz_b, tgt_mask, _ = _pad_list(tgt_xyz)
    ref_src_corr = _reference_attention(params, src_feats_padded, tgt_feats_padded,
                                        jnp.transpose(tgt_xyz_b, (1, 0, 2)), tgt_mask)
    ref_tgt_corr = _reference_attention(params, tgt_feats_padded, src_feats_padded,
                                        jnp.transpose(src_xyz_b, (1, 0, 2)), src_mask)
    ref_src_ovl = jnp.einsum('qbd,de->qbe', src_feats_padded, params["wc"]) + params["bc"][0]
    ref_tgt_ovl = jnp.einsum('qbd,de->qbe', tgt_feats_padded, params["wc"]) + params["bc"][0]

    # Tolerance loosened slightly vs f32 exact to cover approx reciprocal in the softmax denom.
    TOL = dict(atol=3e-3, rtol=3e-3)
    for b, l in enumerate(src_lens_in):
        assert src_corr_list[b].shape == (l, 3) and src_overlap_list[b].shape == (l, 1)
        assert jnp.allclose(src_corr_list[b], ref_src_corr[:l, b, :], **TOL)
        assert jnp.allclose(src_overlap_list[b], ref_src_ovl[:l, b, :], **TOL)
    for b, l in enumerate(tgt_lens_in):
        assert tgt_corr_list[b].shape == (l, 3) and tgt_overlap_list[b].shape == (l, 1)
        assert jnp.allclose(tgt_corr_list[b], ref_tgt_corr[:l, b, :], **TOL)
        assert jnp.allclose(tgt_overlap_list[b], ref_tgt_ovl[:l, b, :], **TOL)

    print("KERNEL_OK")
</pallas_src>

<mosaic_0001>
module attributes {stable_mosaic.version = 11 : i64} {
  func.func @_corr_decoder_kernel(%arg0: i32, %arg1: i32, %arg2: i32, %arg3: i32, %arg4: memref<2x2xi32, #tpu.memory_space<smem>>, %arg5: memref<1x1x32x128xf32, #tpu.memory_space<vmem>>, %arg6: memref<1x1x32x128xf32, #tpu.memory_space<vmem>>, %arg7: memref<1x1x32x128xf32, #tpu.memory_space<vmem>>, %arg8: memref<128x256xf32, #tpu.memory_space<vmem>>, %arg9: memref<1x256xf32, #tpu.memory_space<vmem>>, %arg10: memref<128x128xf32, #tpu.memory_space<vmem>>, %arg11: memref<1x128xf32, #tpu.memory_space<vmem>>, %arg12: memref<1x1x32x128xf32, #tpu.memory_space<vmem>>, %arg13: memref<32x256xf32, #tpu.memory_space<vmem>>, %arg14: memref<32x1xf32, #tpu.memory_space<vmem>>, %arg15: memref<32x1xf32, #tpu.memory_space<vmem>>, %arg16: memref<32x128xf32, #tpu.memory_space<vmem>>) attributes {dimension_semantics = [#tpu.dimension_semantics<parallel>, #tpu.dimension_semantics<parallel>, #tpu.dimension_semantics<parallel>, #tpu.dimension_semantics<arbitrary>], iteration_bounds = array<i64: 2, 2, 3, 3>, scalar_prefetch = 1 : i64, scratch_operands = 4 : i64, tpu.core_type = #tpu.core_type<tc>, window_params = [{transform_indices = @transform_0, window_bounds = array<i64: 1, 1, 32, 128>}, {transform_indices = @transform_1, window_bounds = array<i64: 1, 1, 32, 128>}, {transform_indices = @transform_2, window_bounds = array<i64: 1, 1, 32, 128>}, {pipeline_mode = #tpu.pipeline_mode<synchronous>, transform_indices = @transform_3, window_bounds = array<i64: 128, 256>}, {pipeline_mode = #tpu.pipeline_mode<synchronous>, transform_indices = @transform_4, window_bounds = array<i64: 1, 256>}, {pipeline_mode = #tpu.pipeline_mode<synchronous>, transform_indices = @transform_5, window_bounds = array<i64: 128, 128>}, {pipeline_mode = #tpu.pipeline_mode<synchronous>, transform_indices = @transform_6, window_bounds = array<i64: 1, 128>}, {transform_indices = @transform_7, window_bounds = array<i64: 1, 1, 32, 128>}]} {
    %c0_i32 = arith.constant 0 : i32
    %0 = arith.cmpi eq, %arg3, %c0_i32 : i32
    %1 = arith.extui %0 : i1 to i32
    %c0_i32_0 = arith.constant 0 : i32
    %2 = arith.cmpi ne, %1, %c0_i32_0 : i32
    scf.if %2 {
      %c0_33 = arith.constant 0 : index
      %c0_34 = arith.constant 0 : index
      %c0_35 = arith.constant 0 : index
      %c0_36 = arith.constant 0 : index
      %53 = vector.load %arg5[%c0_33, %c0_34, %c0_35, %c0_36] : memref<1x1x32x128xf32, #tpu.memory_space<vmem>>, vector<1x1x32x128xf32>
      %54 = vector.shape_cast %53 : vector<1x1x32x128xf32> to vector<32x128xf32>
      %c0_37 = arith.constant 0 : index
      %c0_38 = arith.constant 0 : index
      %55 = vector.load %arg8[%c0_37, %c0_38] : memref<128x256xf32, #tpu.memory_space<vmem>>, vector<128x256xf32>
      %cst_39 = arith.constant dense<0.000000e+00> : vector<32x256xf32>
      %56 = tpu.matmul %54, %55, %cst_39 {dimension_numbers = #tpu.dot_dimension_numbers<[1], [0], [0], [1], [0, 0, 1, 1], [], []>} : vector<32x128xf32>, vector<128x256xf32>, vector<32x256xf32> -> vector<32x256xf32>
      %c0_40 = arith.constant 0 : index
      %c0_41 = arith.constant 0 : index
      %57 = vector.load %arg9[%c0_40, %c0_41] : memref<1x256xf32, #tpu.memory_space<vmem>>, vector<1x256xf32>
      %58 = vector.broadcast %57 : vector<1x256xf32> to vector<32x256xf32>
      %59 = arith.addf %56, %58 : vector<32x256xf32>
      %c0_42 = arith.constant 0 : index
      %c0_43 = arith.constant 0 : index
      %60 = vector.load %arg13[%c0_42, %c0_43] : memref<32x256xf32, #tpu.memory_space<vmem>>, vector<32x256xf32>
      tpu.vector_store %arg13[%c0_42, %c0_43], %59 {strides = array<i32>} : memref<32x256xf32, #tpu.memory_space<vmem>>, vector<32x256xf32>,
      %cst_44 = arith.constant -1.000000e+30 : f32
      %61 = vector.broadcast %cst_44 : f32 to vector<32x1xf32>
      %c0_45 = arith.constant 0 : index
      %c0_46 = arith.constant 0 : index
      %62 = vector.load %arg14[%c0_45, %c0_46] : memref<32x1xf32, #tpu.memory_space<vmem>>, vector<32x1xf32>
      tpu.vector_store %arg14[%c0_45, %c0_46], %61 {strides = array<i32>} : memref<32x1xf32, #tpu.memory_space<vmem>>, vector<32x1xf32>,
      %cst_47 = arith.constant 0.000000e+00 : f32
      %63 = vector.broadcast %cst_47 : f32 to vector<32x1xf32>
      %c0_48 = arith.constant 0 : index
      %c0_49 = arith.constant 0 : index
      %64 = vector.load %arg15[%c0_48, %c0_49] : memref<32x1xf32, #tpu.memory_space<vmem>>, vector<32x1xf32>
      tpu.vector_store %arg15[%c0_48, %c0_49], %63 {strides = array<i32>} : memref<32x1xf32, #tpu.memory_space<vmem>>, vector<32x1xf32>,
      %cst_50 = arith.constant 0.000000e+00 : f32
      %65 = vector.broadcast %cst_50 : f32 to vector<32x128xf32>
      %c0_51 = arith.constant 0 : index
      %c0_52 = arith.constant 0 : index
      %66 = vector.load %arg16[%c0_51, %c0_52] : memref<32x128xf32, #tpu.memory_space<vmem>>, vector<32x128xf32>
      tpu.vector_store %arg16[%c0_51, %c0_52], %65 {strides = array<i32>} : memref<32x128xf32, #tpu.memory_space<vmem>>, vector<32x128xf32>,
    } else {
    }
    %c0 = arith.constant 0 : index
    %c0_1 = arith.constant 0 : index
    %3 = vector.load %arg13[%c0, %c0_1] : memref<32x256xf32, #tpu.memory_space<vmem>>, vector<32x128xf32>
    %c0_2 = arith.constant 0 : index
    %c0_3 = arith.constant 0 : index
    %c0_4 = arith.constant 0 : index
    %c0_5 = arith.constant 0 : index
    %4 = vector.load %arg6[%c0_2, %c0_3, %c0_4, %c0_5] : memref<1x1x32x128xf32, #tpu.memory_space<vmem>>, vector<1x1x32x128xf32>
    %5 = vector.shape_cast %4 : vector<1x1x32x128xf32> to vector<32x128xf32>
    %c0_6 = arith.constant 0 : index
    %c0_7 = arith.constant 0 : index
    %6 = vector.load %arg10[%c0_6, %c0_7] : memref<128x128xf32, #tpu.memory_space<vmem>>, vector<128x128xf32>
    %cst = arith.constant dense<0.000000e+00> : vector<32x128xf32>
    %7 = tpu.matmul %5, %6, %cst {dimension_numbers = #tpu.dot_dimension_numbers<[1], [0], [0], [1], [0, 0, 1, 1], [], []>} : vector<32x128xf32>, vector<128x128xf32>, vector<32x128xf32> -> vector<32x128xf32>
    %c0_8 = arith.constant 0 : index
    %c0_9 = arith.constant 0 : index
    %8 = vector.load %arg11[%c0_8, %c0_9] : memref<1x128xf32, #tpu.memory_space<vmem>>, vector<1x128xf32>
    %9 = vector.broadcast %8 : vector<1x128xf32> to vector<32x128xf32>
    %10 = arith.addf %7, %9 : vector<32x128xf32>
    %cst_10 = arith.constant dense<0.000000e+00> : vector<32x32xf32>
    %11 = tpu.matmul %3, %10, %cst_10 {dimension_numbers = #tpu.dot_dimension_numbers<[1], [1], [0], [0], [0, 0, 1, 0], [], []>} : vector<32x128xf32>, vector<32x128xf32>, vector<32x32xf32> -> vector<32x32xf32>
    %12 = arith.index_cast %arg0 : i32 to index
    %13 = arith.index_cast %arg1 : i32 to index
    %14 = memref.load %arg4[%12, %13] : memref<2x2xi32, #tpu.memory_space<smem>>
    %15 = tpu.iota {dimensions = array<i32: 1>} : vector<1x32xi32>
    %c32_i32 = arith.constant 32 : i32
    %16 = arith.muli %arg3, %c32_i32 : i32
    %17 = vector.broadcast %16 : i32 to vector<1x32xi32>
    %18 = arith.addi %15, %17 : vector<1x32xi32>
    %19 = vector.broadcast %14 : i32 to vector<1x32xi32>
    %20 = arith.cmpi slt, %18, %19 : vector<1x32xi32>
    %cst_11 = arith.constant 0.000000e+00 : f32
    %cst_12 = arith.constant -1.000000e+30 : f32
    %21 = vector.broadcast %cst_11 : f32 to vector<1x32xf32>
    %22 = vector.broadcast %cst_12 : f32 to vector<1x32xf32>
    %23 = arith.select %20, %21, %22 : vector<1x32xi1>, vector<1x32xf32>
    %24 = vector.broadcast %23 : vector<1x32xf32> to vector<32x32xf32>
    %25 = arith.addf %11, %24 : vector<32x32xf32>
    %c0_13 = arith.constant 0 : index
    %c0_14 = arith.constant 0 : index
    %26 = vector.load %arg14[%c0_13, %c0_14] : memref<32x1xf32, #tpu.memory_space<vmem>>, vector<32x1xf32>
    %cst_15 = arith.constant dense<0xFF800000> : vector<32xf32>
    %27 = vector.multi_reduction <maximumf>, %25, %cst_15 [1] : vector<32x32xf32> to vector<32xf32>
    %28 = vector.shape_cast %27 : vector<32xf32> to vector<32x1xf32>
    %29 = arith.maximumf %26, %28 : vector<32x1xf32>
    %30 = arith.subf %26, %29 : vector<32x1xf32>
    %31 = math.exp %30 : vector<32x1xf32>
    %32 = vector.broadcast %29 : vector<32x1xf32> to vector<32x32xf32>
    %33 = arith.subf %25, %32 : vector<32x32xf32>
    %34 = math.exp %33 : vector<32x32xf32>
    %c0_16 = arith.constant 0 : index
    %c0_17 = arith.constant 0 : index
    %35 = vector.load %arg15[%c0_16, %c0_17] : memref<32x1xf32, #tpu.memory_space<vmem>>, vector<32x1xf32>
    %36 = arith.mulf %31, %35 : vector<32x1xf32>
    %cst_18 = arith.constant dense<0.000000e+00> : vector<32xf32>
    %37 = vector.multi_reduction <add>, %34, %cst_18 [1] : vector<32x32xf32> to vector<32xf32>
    %38 = vector.shape_cast %37 : vector<32xf32> to vector<32x1xf32>
    %39 = arith.addf %36, %38 : vector<32x1xf32>
    %c0_19 = arith.constant 0 : index
    %c0_20 = arith.constant 0 : index
    %40 = vector.load %arg15[%c0_19, %c0_20] : memref<32x1xf32, #tpu.memory_space<vmem>>, vector<32x1xf32>
    tpu.vector_store %arg15[%c0_19, %c0_20], %39 {strides = array<i32>} : memref<32x1xf32, #tpu.memory_space<vmem>>, vector<32x1xf32>,
    %c0_21 = arith.constant 0 : index
    %c0_22 = arith.constant 0 : index
    %41 = vector.load %arg16[%c0_21, %c0_22] : memref<32x128xf32, #tpu.memory_space<vmem>>, vector<32x128xf32>
    %42 = vector.broadcast %31 : vector<32x1xf32> to vector<32x128xf32>
    %43 = arith.mulf %42, %41 : vector<32x128xf32>
    %c0_23 = arith.constant 0 : index
    %c0_24 = arith.constant 0 : index
    %c0_25 = arith.constant 0 : index
    %c0_26 = arith.constant 0 : index
    %44 = vector.load %arg7[%c0_23, %c0_24, %c0_25, %c0_26] : memref<1x1x32x128xf32, #tpu.memory_space<vmem>>, vector<1x1x32x128xf32>
    %45 = vector.shape_cast %44 : vector<1x1x32x128xf32> to vector<32x128xf32>
    %cst_27 = arith.constant dense<0.000000e+00> : vector<32x128xf32>
    %46 = tpu.matmul %34, %45, %cst_27 {dimension_numbers = #tpu.dot_dimension_numbers<[1], [0], [0], [1], [0, 0, 1, 1], [], []>} : vector<32x32xf32>, vector<32x128xf32>, vector<32x128xf32> -> vector<32x128xf32>
    %47 = arith.addf %43, %46 : vector<32x128xf32>
    %c0_28 = arith.constant 0 : index
    %c0_29 = arith.constant 0 : index
    %48 = vector.load %arg16[%c0_28, %c0_29] : memref<32x128xf32, #tpu.memory_space<vmem>>, vector<32x128xf32>
    tpu.vector_store %arg16[%c0_28, %c0_29], %47 {strides = array<i32>} : memref<32x128xf32, #tpu.memory_space<vmem>>, vector<32x128xf32>,
    %c0_30 = arith.constant 0 : index
    %c0_31 = arith.constant 0 : index
    %49 = vector.load %arg14[%c0_30, %c0_31] : memref<32x1xf32, #tpu.memory_space<vmem>>, vector<32x1xf32>
    tpu.vector_store %arg14[%c0_30, %c0_31], %29 {strides = array<i32>} : memref<32x1xf32, #tpu.memory_space<vmem>>, vector<32x1xf32>,
    %c2_i32 = arith.constant 2 : i32
    %50 = arith.cmpi eq, %arg3, %c2_i32 : i32
    %51 = arith.extui %50 : i1 to i32
    %c0_i32_32 = arith.constant 0 : i32
    %52 = arith.cmpi ne, %51, %c0_i32_32 : i32
    scf.if %52 {
      %c0_33 = arith.constant 0 : index
      %c0_34 = arith.constant 0 : index
      %53 = vector.load %arg15[%c0_33, %c0_34] : memref<32x1xf32, #tpu.memory_space<vmem>>, vector<32x1xf32>
      %54 = tpu.reciprocal %53 {approx = true} : vector<32x1xf32> -> vector<32x1xf32>
      %c0_35 = arith.constant 0 : index
      %c0_36 = arith.constant 0 : index
      %55 = vector.load %arg16[%c0_35, %c0_36] : memref<32x128xf32, #tpu.memory_space<vmem>>, vector<32x128xf32>
      %56 = vector.broadcast %54 : vector<32x1xf32> to vector<32x128xf32>
      %57 = arith.mulf %55, %56 : vector<32x128xf32>
      %c0_37 = arith.constant 0 : index
      %c128 = arith.constant 128 : index
      %58 = vector.load %arg13[%c0_37, %c128] : memref<32x256xf32, #tpu.memory_space<vmem>>, vector<32x128xf32>
      %59 = arith.addf %57, %58 : vector<32x128xf32>
      %c0_38 = arith.constant 0 : index
      %c0_39 = arith.constant 0 : index
      %c0_40 = arith.constant 0 : index
      %c0_41 = arith.constant 0 : index
      %60 = vector.load %arg12[%c0_38, %c0_39, %c0_40, %c0_41] : memref<1x1x32x128xf32, #tpu.memory_space<vmem>>, vector<1x1x32x128xf32>
      %61 = vector.shape_cast %60 : vector<1x1x32x128xf32> to vector<32x128xf32>
      %62 = vector.shape_cast %59 : vector<32x128xf32> to vector<1x1x32x128xf32>
      tpu.vector_store %arg12[%c0_38, %c0_39, %c0_40, %c0_41], %62 {strides = array<i32>} : memref<1x1x32x128xf32, #tpu.memory_space<vmem>>, vector<1x1x32x128xf32>,
    } else {
    }
    return
  }
  func.func @transform_0(%arg0: i32, %arg1: i32, %arg2: i32, %arg3: i32, %arg4: memref<2x2xi32, #tpu.memory_space<smem>>) -> (i32, i32, i32, i32) {
    %c0_i32 = arith.constant 0 : i32
    %c0_i32_0 = arith.constant 0 : i32
    return %arg0, %arg1, %arg2, %c0_i32 : i32, i32, i32, i32
  }
  func.func @transform_1(%arg0: i32, %arg1: i32, %arg2: i32, %arg3: i32, %arg4: memref<2x2xi32, #tpu.memory_space<smem>>) -> (i32, i32, i32, i32) {
    %c1_i32 = arith.constant 1 : i32
    %0 = arith.subi %c1_i32, %arg0 : i32
    %c0_i32 = arith.constant 0 : i32
    %c0_i32_0 = arith.constant 0 : i32
    return %0, %arg1, %arg3, %c0_i32 : i32, i32, i32, i32
  }
  func.func @transform_2(%arg0: i32, %arg1: i32, %arg2: i32, %arg3: i32, %arg4: memref<2x2xi32, #tpu.memory_space<smem>>) -> (i32, i32, i32, i32) {
    %c1_i32 = arith.constant 1 : i32
    %0 = arith.subi %c1_i32, %arg0 : i32
    %c0_i32 = arith.constant 0 : i32
    %c0_i32_0 = arith.constant 0 : i32
    return %0, %arg1, %arg3, %c0_i32 : i32, i32, i32, i32
  }
  func.func @transform_3(%arg0: i32, %arg1: i32, %arg2: i32, %arg3: i32, %arg4: memref<2x2xi32, #tpu.memory_space<smem>>) -> (i32, i32) {
    %c0_i32 = arith.constant 0 : i32
    %c0_i32_0 = arith.constant 0 : i32
    %c0_i32_1 = arith.constant 0 : i32
    return %c0_i32, %c0_i32_0 : i32, i32
  }
  func.func @transform_4(%arg0: i32, %arg1: i32, %arg2: i32, %arg3: i32, %arg4: memref<2x2xi32, #tpu.memory_space<smem>>) -> (i32, i32) {
    %c0_i32 = arith.constant 0 : i32
    %c0_i32_0 = arith.constant 0 : i32
    %c0_i32_1 = arith.constant 0 : i32
    return %c0_i32, %c0_i32_0 : i32, i32
  }
  func.func @transform_5(%arg0: i32, %arg1: i32, %arg2: i32, %arg3: i32, %arg4: memref<2x2xi32, #tpu.memory_space<smem>>) -> (i32, i32) {
    %c0_i32 = arith.constant 0 : i32
    %c0_i32_0 = arith.constant 0 : i32
    %c0_i32_1 = arith.constant 0 : i32
    return %c0_i32, %c0_i32_0 : i32, i32
  }
  func.func @transform_6(%arg0: i32, %arg1: i32, %arg2: i32, %arg3: i32, %arg4: memref<2x2xi32, #tpu.memory_space<smem>>) -> (i32, i32) {
    %c0_i32 = arith.constant 0 : i32
    %c0_i32_0 = arith.constant 0 : i32
    %c0_i32_1 = arith.constant 0 : i32
    return %c0_i32, %c0_i32_0 : i32, i32
  }
  func.func @transform_7(%arg0: i32, %arg1: i32, %arg2: i32, %arg3: i32, %arg4: memref<2x2xi32, #tpu.memory_space<smem>>) -> (i32, i32, i32, i32) {
    %c0_i32 = arith.constant 0 : i32
    %c0_i32_0 = arith.constant 0 : i32
    return %arg0, %arg1, %arg2, %c0_i32 : i32, i32, i32, i32
  }
}

</mosaic_0001>

<llo_original>
// kernel: tpu_custom_call.1
$region0: #{tpu_custom_call.1}
  #allocation0 [shape = 'u32[]', space=smem, size = 0x4, offset = 0x4, fixed_abs, tag = 'smem constant byte address 0x4 - core index']
  #allocation1 [shape = 'u32[144,128]{1,0:T(1,128)}', space=vmem, size = 0x12000, scoped, tag = 'internal scratch']
  #allocation2 [shape = 'f32[32,256]{1,0:T(8,128)}', space=vmem, size = 0x8000, scoped, tag = 'scratch operand']
  #allocation3 [shape = 'f32[32,1]{1,0:T(8,128)}', space=vmem, size = 0x4000, scoped, tag = 'scratch operand']
  #allocation4 [shape = 'f32[32,1]{1,0:T(8,128)}', space=vmem, size = 0x4000, scoped, tag = 'scratch operand']
  #allocation5 [shape = 'f32[32,128]{1,0:T(8,128)}', space=vmem, size = 0x4000, scoped, tag = 'scratch operand']
  #allocation6 [shape = 's32[1]{0}', space=sflag, size = 0x4, scoped, tag = 'scoped memory for tpu_custom_call.1']
  #allocation7 [shape = 'u8[1024]{0}', space=smem, size = 0x400, scoped, tag = 'prefetched SMEM operand 0']
  %s0 = inlined_call_operand.hbm [shape: s32[2,2], index: 0, kind: input, shape index: {}]
  %s1 = inlined_call_operand.hbm [shape: f32[2,2,96,128], index: 1, kind: input, shape index: {}]
  %s2 = inlined_call_operand.hbm [shape: f32[2,2,96,128], index: 2, kind: input, shape index: {}]
  %s3 = inlined_call_operand.hbm [shape: f32[2,2,96,128], index: 3, kind: input, shape index: {}]
  %s4 = inlined_call_operand.hbm [shape: f32[128,256], index: 4, kind: input, shape index: {}]
  %s5 = inlined_call_operand.vmem [shape: f32[1,256], index: 5, kind: input, shape index: {}]
  %s6 = inlined_call_operand.hbm [shape: f32[128,128], index: 6, kind: input, shape index: {}]
  %s7 = inlined_call_operand.vmem [shape: f32[1,128], index: 7, kind: input, shape index: {}]
  %s8 = inlined_call_operand.hbm [shape: f32[2,2,96,128], index: 8, kind: output, shape index: {}]
  %s9 = sld [smem:[#allocation0]]
  $region89: #{tpu_custom_call.1} parent=0
    _
  %s11 = ssub.s32 1, %s9
  %s12 = scalar_select 0, %s11, %s9
  %14 = dma.hbm_to_smem %s0, 32, [#allocation7], [#allocation6]
  %15 = dma.done [#allocation6], 32
  %16 = sfence
  $region1: #{tpu_custom_call.1} parent=0
    #allocation8 [shape = 'u8[32768]{0}', space=vmem, size = 0x8000, scoped, tag = 'input window, operand 1']
    #allocation9 [shape = 's32[2]{0}', space=sflag, size = 0x8, scoped, tag = 'scoped memory for tpu_custom_call.1']
    #allocation10 [shape = 's32[2]{0}', space=sflag, size = 0x8, scoped, tag = 'scoped memory for tpu_custom_call.1']
    #allocation11 [shape = 'u8[32768]{0}', space=vmem, size = 0x8000, scoped, tag = 'input window, operand 2']
    #allocation12 [shape = 's32[2]{0}', space=sflag, size = 0x8, scoped, tag = 'scoped memory for tpu_custom_call.1']
    #allocation13 [shape = 'u8[32768]{0}', space=vmem, size = 0x8000, scoped, tag = 'input window, operand 3']
    #allocation14 [shape = 'u8[131072]{0}', space=vmem, size = 0x20000, scoped, tag = 'input window, operand 4, single buffered']
    #allocation15 [shape = 's32[1]{0}', space=sflag, size = 0x4, scoped, tag = 'scoped memory for tpu_custom_call.1']
    #allocation16 [shape = 'u8[65536]{0}', space=vmem, size = 0x10000, scoped, tag = 'input window, operand 6, single buffered']
    #allocation17 [shape = 'u8[32768]{0}', space=vmem, size = 0x8000, scoped, tag = 'output window, operand 0']
    %17 = vsyncpa [#allocation9], 0
    %s18 = scalar_lea.sflag [#allocation9], 1
    %19 = vsyncpa %s18, 0
    %20 = vsyncpa [#allocation12], 0
    %s21 = scalar_lea.sflag [#allocation12], 1
    %22 = vsyncpa %s21, 0
    %23 = vsyncpa [#allocation15], 0
    %24 = vsyncpa [#allocation10], 0
    %s25 = scalar_lea.sflag [#allocation10], 1
    %26 = vsyncpa %s25, 0
    loop: start=0, step=1, limit=38
    $region2: #{tpu_custom_call.1} parent=1 // loop_pre_header
      _
    $region3: #{tpu_custom_call.1} parent=1 // loop_header
      %s28 = sphi 0, %s32
      %p29 = scmp.ge.s32.totalorder %s28, 38
      %s35 = sphi 0, %s61
      %s36 = sphi 0, %s57
      %s37 = sphi 0, %s53
      %s38 = sphi 0, %s49
      %s39 = sphi 0, %s35
      %s40 = sphi 0, %s36
      %s41 = sphi 0, %s37
      %s42 = sphi 0, %s38
      %s43 = sphi 0, %s39
      %s44 = sphi 0, %s40
      %s45 = sphi 0, %s41
      %s46 = sphi 0, %s42
      %s68 = sphi 0, %s70
      %s71 = sphi 0, %s68
      %s72 = sphi 0, %s71
      %s88 = sphi 0, %s72
      %s100 = sphi 0, %s102
      %s103 = sphi 0, %s100
      %s104 = sphi 0, %s103
      %s120 = sphi 0, %s104
      %s132 = sphi 0, %s134
      %s135 = sphi 0, %s132
      %s136 = sphi 0, %s135
      %s152 = sphi 0, %s136
      %s156 = sphi 0, %s156
      %s158 = sphi 0, %s156
      %s159 = sphi 0, %s158
      %s173 = sphi 0, %s159
      %s177 = sphi 0, %s177
      %s179 = sphi 0, %s177
      %s180 = sphi 0, %s179
      %s194 = sphi 0, %s180
      %s198 = sphi 0, %s198
      %s200 = sphi 0, %s198
      %s201 = sphi 0, %s200
      %s215 = sphi 0, %s201
      %s219 = sphi 0, %s219
      %s221 = sphi 0, %s219
      %s222 = sphi 0, %s221
      %s236 = sphi 0, %s222
      %s246 = sphi 0, %s248
      %s249 = sphi 0, %s246
      %s250 = sphi 0, %s249
      %s266 = sphi 0, %s250
    $region4: #{tpu_custom_call.1} parent=1 // loop_header_branch
      %31 = sbr.rel (%p29) target = $region8
    $region5: #{tpu_custom_call.1} parent=1 // loop_body
      %s33 = ssub.s32 %s28, 1
      %s34 = ssub.s32 %s28, 2
      %s47 = sadd.s32 1, %s38
      %p48 = scmp.ge.s32.totalorder %s47, 3
      %s49 = scalar_select %p48, 0, %s47
      %s50 = sadd.s32 1, %s37
      %s51 = scalar_select %p48, %s50, %s37
      %p52 = scmp.ge.s32.totalorder %s51, 3
      %s53 = scalar_select %p52, 0, %s51
      %s54 = sadd.s32 1, %s36
      %s55 = scalar_select %p52, %s54, %s36
      %p56 = scmp.ge.s32.totalorder %s55, 2
      %s57 = scalar_select %p56, 0, %s55
      %s58 = sadd.s32 1, %s35
      %s59 = scalar_select %p56, %s58, %s35
      %p60 = scmp.ge.s32.totalorder %s59, 2
      %s61 = scalar_select %p60, 0, %s59
      %s62 = ssub.s32 %s35, %s61
      %s63 = ssub.s32 %s36, %s57
      %s64 = sor.u32 %s62, %s63
      %s65 = ssub.s32 %s37, %s53
      %s66 = sor.u32 %s64, %s65
      %p67 = scmp.eq.s32.totalorder %s66, 0
      %s69 = sadd.s32 %s68, 1
      %s70 = scalar_select %p67, %s68, %s69
      %p73 = pneg %p67
      %p74 = scmp.eq.s32.totalorder %s28, 35
      %p75 = por %p73, %p74
      %p76 = scmp.ne.s32.totalorder %s68, %s71
      %p77 = scmp.eq.s32.totalorder %s28, 0
      %p78 = por %p76, %p77
      %p79 = scmp.ne.s32.totalorder %s68, %s71
      %p80 = scmp.eq.s32.totalorder %s33, 35
      %p81 = por %p79, %p80
      %p82 = scmp.ne.s32.totalorder %s71, %s72
      %p83 = scmp.eq.s32.totalorder %s33, 0
      %p84 = por %p82, %p83
      %p85 = scmp.ne.s32.totalorder %s71, %s72
      %p86 = scmp.eq.s32.totalorder %s34, 35
      %p87 = por %p85, %p86
      %p89 = scmp.ne.s32.totalorder %s72, %s88
      %p90 = scmp.eq.s32.totalorder %s34, 0
      %p91 = por %p89, %p90
      %s92 = ssub.s32 1, %s35
      %s93 = ssub.s32 1, %s61
      %s94 = ssub.s32 %s92, %s93
      %s95 = ssub.s32 %s36, %s57
      %s96 = sor.u32 %s94, %s95
      %s97 = ssub.s32 %s38, %s49
      %s98 = sor.u32 %s96, %s97
      %p99 = scmp.eq.s32.totalorder %s98, 0
      %s101 = sadd.s32 %s100, 1
      %s102 = scalar_select %p99, %s100, %s101
      %p105 = pneg %p99
      %p106 = scmp.eq.s32.totalorder %s28, 35
      %p107 = por %p105, %p106
      %p108 = scmp.ne.s32.totalorder %s100, %s103
      %p109 = scmp.eq.s32.totalorder %s28, 0
      %p110 = por %p108, %p109
      %p111 = scmp.ne.s32.totalorder %s100, %s103
      %p112 = scmp.eq.s32.totalorder %s33, 35
      %p113 = por %p111, %p112
      %p114 = scmp.ne.s32.totalorder %s103, %s104
      %p115 = scmp.eq.s32.totalorder %s33, 0
      %p116 = por %p114, %p115
      %p117 = scmp.ne.s32.totalorder %s103, %s104
      %p118 = scmp.eq.s32.totalorder %s34, 35
      %p119 = por %p117, %p118
      %p121 = scmp.ne.s32.totalorder %s104, %s120
      %p122 = scmp.eq.s32.totalorder %s34, 0
      %p123 = por %p121, %p122
      %s124 = ssub.s32 1, %s35
      %s125 = ssub.s32 1, %s61
      %s126 = ssub.s32 %s124, %s125
      %s127 = ssub.s32 %s36, %s57
      %s128 = sor.u32 %s126, %s127
      %s129 = ssub.s32 %s38, %s49
      %s130 = sor.u32 %s128, %s129
      %p131 = scmp.eq.s32.totalorder %s130, 0
      %s133 = sadd.s32 %s132, 1
      %s134 = scalar_select %p131, %s132, %s133
      %p137 = pneg %p131
      %p138 = scmp.eq.s32.totalorder %s28, 35
      %p139 = por %p137, %p138
      %p140 = scmp.ne.s32.totalorder %s132, %s135
      %p141 = scmp.eq.s32.totalorder %s28, 0
      %p142 = por %p140, %p141
      %p143 = scmp.ne.s32.totalorder %s132, %s135
      %p144 = scmp.eq.s32.totalorder %s33, 35
      %p145 = por %p143, %p144
      %p146 = scmp.ne.s32.totalorder %s135, %s136
      %p147 = scmp.eq.s32.totalorder %s33, 0
      %p148 = por %p146, %p147
      %p149 = scmp.ne.s32.totalorder %s135, %s136
      %p150 = scmp.eq.s32.totalorder %s34, 35
      %p151 = por %p149, %p150
      %p153 = scmp.ne.s32.totalorder %s136, %s152
      %p154 = scmp.eq.s32.totalorder %s34, 0
      %p155 = por %p153, %p154
      %s157 = sadd.s32 %s156, 1
      %p160 = scmp.eq.s32.totalorder %s28, 35
      %p161 = scmp.ne.s32.totalorder %s156, %s158
      %p162 = scmp.eq.s32.totalorder %s28, 0
      %p163 = por %p161, %p162
      %p164 = scmp.ne.s32.totalorder %s156, %s158
      %p165 = scmp.eq.s32.totalorder %s33, 35
      %p166 = por %p164, %p165
      %p167 = scmp.ne.s32.totalorder %s158, %s159
      %p168 = scmp.eq.s32.totalorder %s33, 0
      %p169 = por %p167, %p168
      %p170 = scmp.ne.s32.totalorder %s158, %s159
      %p171 = scmp.eq.s32.totalorder %s34, 35
      %p172 = por %p170, %p171
      %p174 = scmp.ne.s32.totalorder %s159, %s173
      %p175 = scmp.eq.s32.totalorder %s34, 0
      %p176 = por %p174, %p175
      %s178 = sadd.s32 %s177, 1
      %p181 = scmp.eq.s32.totalorder %s28, 35
      %p182 = scmp.ne.s32.totalorder %s177, %s179
      %p183 = scmp.eq.s32.totalorder %s28, 0
      %p184 = por %p182, %p183
      %p185 = scmp.ne.s32.totalorder %s177, %s179
      %p186 = scmp.eq.s32.totalorder %s33, 35
      %p187 = por %p185, %p186
      %p188 = scmp.ne.s32.totalorder %s179, %s180
      %p189 = scmp.eq.s32.totalorder %s33, 0
      %p190 = por %p188, %p189
      %p191 = scmp.ne.s32.totalorder %s179, %s180
      %p192 = scmp.eq.s32.totalorder %s34, 35
      %p193 = por %p191, %p192
      %p195 = scmp.ne.s32.totalorder %s180, %s194
      %p196 = scmp.eq.s32.totalorder %s34, 0
      %p197 = por %p195, %p196
      %s199 = sadd.s32 %s198, 1
      %p202 = scmp.eq.s32.totalorder %s28, 35
      %p203 = scmp.ne.s32.totalorder %s198, %s200
      %p204 = scmp.eq.s32.totalorder %s28, 0
      %p205 = por %p203, %p204
      %p206 = scmp.ne.s32.totalorder %s198, %s200
      %p207 = scmp.eq.s32.totalorder %s33, 35
      %p208 = por %p206, %p207
      %p209 = scmp.ne.s32.totalorder %s200, %s201
      %p210 = scmp.eq.s32.totalorder %s33, 0
      %p211 = por %p209, %p210
      %p212 = scmp.ne.s32.totalorder %s200, %s201
      %p213 = scmp.eq.s32.totalorder %s34, 35
      %p214 = por %p212, %p213
      %p216 = scmp.ne.s32.totalorder %s201, %s215
      %p217 = scmp.eq.s32.totalorder %s34, 0
      %p218 = por %p216, %p217
      %s220 = sadd.s32 %s219, 1
      %p223 = scmp.eq.s32.totalorder %s28, 35
      %p224 = scmp.ne.s32.totalorder %s219, %s221
      %p225 = scmp.eq.s32.totalorder %s28, 0
      %p226 = por %p224, %p225
      %p227 = scmp.ne.s32.totalorder %s219, %s221
      %p228 = scmp.eq.s32.totalorder %s33, 35
      %p229 = por %p227, %p228
      %p230 = scmp.ne.s32.totalorder %s221, %s222
      %p231 = scmp.eq.s32.totalorder %s33, 0
      %p232 = por %p230, %p231
      %p233 = scmp.ne.s32.totalorder %s221, %s222
      %p234 = scmp.eq.s32.totalorder %s34, 35
      %p235 = por %p233, %p234
      %p237 = scmp.ne.s32.totalorder %s222, %s236
      %p238 = scmp.eq.s32.totalorder %s34, 0
      %p239 = por %p237, %p238
      %s240 = ssub.s32 %s35, %s61
      %s241 = ssub.s32 %s36, %s57
      %s242 = sor.u32 %s240, %s241
      %s243 = ssub.s32 %s37, %s53
      %s244 = sor.u32 %s242, %s243
      %p245 = scmp.eq.s32.totalorder %s244, 0
      %s247 = sadd.s32 %s246, 1
      %s248 = scalar_select %p245, %s246, %s247
      %p251 = pneg %p245
      %p252 = scmp.eq.s32.totalorder %s28, 35
      %p253 = por %p251, %p252
      %p254 = scmp.ne.s32.totalorder %s246, %s249
      %p255 = scmp.eq.s32.totalorder %s28, 0
      %p256 = por %p254, %p255
      %p257 = scmp.ne.s32.totalorder %s246, %s249
      %p258 = scmp.eq.s32.totalorder %s33, 35
      %p259 = por %p257, %p258
      %p260 = scmp.ne.s32.totalorder %s249, %s250
      %p261 = scmp.eq.s32.totalorder %s33, 0
      %p262 = por %p260, %p261
      %p263 = scmp.ne.s32.totalorder %s249, %s250
      %p264 = scmp.eq.s32.totalorder %s34, 35
      %p265 = por %p263, %p264
      %p267 = scmp.ne.s32.totalorder %s250, %s266
      %p268 = scmp.eq.s32.totalorder %s34, 0
      %p269 = por %p267, %p268
      %p270 = scmp.le.s32.totalorder 1, %s28
      %p271 = scmp.lt.s32.totalorder %s28, 37
      %p272 = pnand %p270, %p271
      %p273 = pneg %p272
      // Predicated region
      $region9: #{tpu_custom_call.1} parent=5 // pred_check
        _
      $region10: #{tpu_custom_call.1} parent=5 // pred_check_branch
        %275 = sbr.rel (%p272) target = $region12
      $region11: #{tpu_custom_call.1} parent=5 // pred_region
        %s276 = ssub.s32 %s28, 1
        // Predicated region
        $region13: #{tpu_custom_call.1} parent=11 // pred_check
          %p277 = pneg %p169
        $region14: #{tpu_custom_call.1} parent=11 // pred_check_branch
          %279 = sbr.rel (%p277) target = $region16
        $region15: #{tpu_custom_call.1} parent=11 // pred_region
          %s281 = ssub.s32 4096, 4096
          %282 = vsyncadd [#allocation15], %s281
          %s283 = sshll.u32 [#allocation14], 4
          %s284 = int_to_ptr.vmem [resolvable:$true] %s283
          %289 = dma.hbm_to_vmem [thread:$0]  %s4, 4096, %s284, [#allocation15], 256, 256, 16
        $region16: #{tpu_custom_call.1} parent=11 // pred_fallthru
          _
        // Predicated region
        $region17: #{tpu_custom_call.1} parent=11 // pred_check
          %p290 = pneg %p190
        $region18: #{tpu_custom_call.1} parent=11 // pred_check_branch
          %292 = sbr.rel (%p290) target = $region20
        $region19: #{tpu_custom_call.1} parent=11 // pred_region
          _
        $region20: #{tpu_custom_call.1} parent=11 // pred_fallthru
          _
        // Predicated region
        $region21: #{tpu_custom_call.1} parent=11 // pred_check
          %p293 = pneg %p211
        $region22: #{tpu_custom_call.1} parent=11 // pred_check_branch
          %295 = sbr.rel (%p293) target = $region24
        $region23: #{tpu_custom_call.1} parent=11 // pred_region
          %s297 = ssub.s32 2048, 2048
          %298 = vsyncadd [#allocation15], %s297
          %s299 = sshll.u32 [#allocation16], 4
          %s300 = int_to_ptr.vmem [resolvable:$true] %s299
          %305 = dma.hbm_to_vmem [thread:$0]  %s6, 2048, %s300, [#allocation15], 128, 128, 8
        $region24: #{tpu_custom_call.1} parent=11 // pred_fallthru
          _
        // Predicated region
        $region25: #{tpu_custom_call.1} parent=11 // pred_check
          %p306 = pneg %p232
        $region26: #{tpu_custom_call.1} parent=11 // pred_check_branch
          %308 = sbr.rel (%p306) target = $region28
        $region27: #{tpu_custom_call.1} parent=11 // pred_region
          _
        $region28: #{tpu_custom_call.1} parent=11 // pred_fallthru
          _
      $region12: #{tpu_custom_call.1} parent=5 // pred_fallthru
        _
      %p309 = scmp.lt.s32.totalorder %s28, 36
      // Predicated region
      $region29: #{tpu_custom_call.1} parent=5 // pred_check
        %p310 = pneg %p309
      $region30: #{tpu_custom_call.1} parent=5 // pred_check_branch
        %312 = sbr.rel (%p310) target = $region32
      $region31: #{tpu_custom_call.1} parent=5 // pred_region
        // Predicated region
        $region33: #{tpu_custom_call.1} parent=31 // pred_check
          %p313 = pneg %p78
        $region34: #{tpu_custom_call.1} parent=31 // pred_check_branch
          %315 = sbr.rel (%p313) target = $region36
        $region35: #{tpu_custom_call.1} parent=31 // pred_region
          %s316 = sand.u32 %s68, 1
          %s317 = scalar_lea.sflag [#allocation9], %s316
          %s318 = sand.u32 %s68, 1
          %s319 = smul.addr %s318, 32
          %s320 = scalar_lea.vmem [#allocation8], %s319
          %s321 = smul.u32 4, %s37
          %s323 = ssub.s32 512, 512
          %324 = vsyncadd %s317, %s323
          %s325 = smul.addr %s36, 12
          %s326 = sadd.s32 %s321, %s325
          %s327 = smul.addr %s35, 24
          %s328 = sadd.s32 %s326, %s327
          %s329 = smul.addr %s328, 128
          %s330 = scalar_lea.hbm %s1, %s329
          %s331 = sshll.u32 %s320, 4
          %s332 = int_to_ptr.vmem [resolvable:$true] %s331
          %337 = dma.hbm_to_vmem [thread:$0]  %s330, 512, %s332, %s317, 128, 128, 8
        $region36: #{tpu_custom_call.1} parent=31 // pred_fallthru
          _
        // Predicated region
        $region37: #{tpu_custom_call.1} parent=31 // pred_check
          %p338 = pneg %p110
        $region38: #{tpu_custom_call.1} parent=31 // pred_check_branch
          %340 = sbr.rel (%p338) target = $region40
        $region39: #{tpu_custom_call.1} parent=31 // pred_region
          %s341 = sand.u32 %s28, 1
          %s342 = scalar_lea.sflag [#allocation12], %s341
          %s343 = sand.u32 %s100, 1
          %s344 = smul.addr %s343, 32
          %s345 = scalar_lea.vmem [#allocation11], %s344
          %s346 = ssub.s32 1, %s35
          %s347 = smul.u32 4, %s38
          %s349 = ssub.s32 512, 512
          %350 = vsyncadd %s342, %s349
          %s351 = smul.addr %s36, 12
          %s352 = sadd.s32 %s347, %s351
          %s353 = smul.addr %s346, 24
          %s354 = sadd.s32 %s352, %s353
          %s355 = smul.addr %s354, 128
          %s356 = scalar_lea.hbm %s2, %s355
          %s357 = sshll.u32 %s345, 4
          %s358 = int_to_ptr.vmem [resolvable:$true] %s357
          %363 = dma.hbm_to_vmem [thread:$0]  %s356, 512, %s358, %s342, 128, 128, 8
        $region40: #{tpu_custom_call.1} parent=31 // pred_fallthru
          _
        // Predicated region
        $region41: #{tpu_custom_call.1} parent=31 // pred_check
          %p364 = pneg %p142
        $region42: #{tpu_custom_call.1} parent=31 // pred_check_branch
          %366 = sbr.rel (%p364) target = $region44
        $region43: #{tpu_custom_call.1} parent=31 // pred_region
          %s367 = sand.u32 %s28, 1
          %s368 = scalar_lea.sflag [#allocation12], %s367
          %s369 = sand.u32 %s132, 1
          %s370 = smul.addr %s369, 32
          %s371 = scalar_lea.vmem [#allocation13], %s370
          %s372 = ssub.s32 1, %s35
          %s373 = smul.u32 4, %s38
          %s375 = ssub.s32 512, 512
          %376 = vsyncadd %s368, %s375
          %s377 = smul.addr %s36, 12
          %s378 = sadd.s32 %s373, %s377
          %s379 = smul.addr %s372, 24
          %s380 = sadd.s32 %s378, %s379
          %s381 = smul.addr %s380, 128
          %s382 = scalar_lea.hbm %s3, %s381
          %s383 = sshll.u32 %s371, 4
          %s384 = int_to_ptr.vmem [resolvable:$true] %s383
          %389 = dma.hbm_to_vmem [thread:$0]  %s382, 512, %s384, %s368, 128, 128, 8
        $region44: #{tpu_custom_call.1} parent=31 // pred_fallthru
          _
      $region32: #{tpu_custom_call.1} parent=5 // pred_fallthru
        _
      %p390 = scmp.le.s32.totalorder 1, %s28
      %p391 = scmp.lt.s32.totalorder %s28, 37
      %p392 = pnand %p390, %p391
      %p393 = pneg %p392
      // Predicated region
      $region45: #{tpu_custom_call.1} parent=5 // pred_check
        _
      $region46: #{tpu_custom_call.1} parent=5 // pred_check_branch
        %395 = sbr.rel (%p392) target = $region48
      $region47: #{tpu_custom_call.1} parent=5 // pred_region
        %s396 = ssub.s32 %s28, 1
        %s397 = sand.u32 %s71, 1
        %s398 = scalar_lea.sflag [#allocation9], %s397
        %s399 = sand.u32 %s71, 1
        %s400 = smul.addr %s399, 32
        %s401 = scalar_lea.vmem [#allocation8], %s400
        // Predicated region
        $region49: #{tpu_custom_call.1} parent=47 // pred_check
          %p402 = pneg %p84
        $region50: #{tpu_custom_call.1} parent=47 // pred_check_branch
          %404 = sbr.rel (%p402) target = $region52
        $region51: #{tpu_custom_call.1} parent=47 // pred_region
          %405 = dma.done %s398, 512
        $region52: #{tpu_custom_call.1} parent=47 // pred_fallthru
          _
        %s406 = sand.u32 %s33, 1
        %s407 = scalar_lea.sflag [#allocation12], %s406
        %s408 = sand.u32 %s103, 1
        %s409 = smul.addr %s408, 32
        %s410 = scalar_lea.vmem [#allocation11], %s409
        // Predicated region
        $region53: #{tpu_custom_call.1} parent=47 // pred_check
          %p411 = pneg %p116
        $region54: #{tpu_custom_call.1} parent=47 // pred_check_branch
          %413 = sbr.rel (%p411) target = $region56
        $region55: #{tpu_custom_call.1} parent=47 // pred_region
          %414 = dma.done %s407, 512
        $region56: #{tpu_custom_call.1} parent=47 // pred_fallthru
          _
        %s415 = sand.u32 %s33, 1
        %s416 = scalar_lea.sflag [#allocation12], %s415
        %s417 = sand.u32 %s135, 1
        %s418 = smul.addr %s417, 32
        %s419 = scalar_lea.vmem [#allocation13], %s418
        // Predicated region
        $region57: #{tpu_custom_call.1} parent=47 // pred_check
          %p420 = pneg %p148
        $region58: #{tpu_custom_call.1} parent=47 // pred_check_branch
          %422 = sbr.rel (%p420) target = $region60
        $region59: #{tpu_custom_call.1} parent=47 // pred_region
          %423 = dma.done %s416, 512
        $region60: #{tpu_custom_call.1} parent=47 // pred_fallthru
          _
        // Predicated region
        $region61: #{tpu_custom_call.1} parent=47 // pred_check
          %p424 = pneg %p169
        $region62: #{tpu_custom_call.1} parent=47 // pred_check_branch
          %426 = sbr.rel (%p424) target = $region64
        $region63: #{tpu_custom_call.1} parent=47 // pred_region
          %427 = dma.done [#allocation15], 4096
        $region64: #{tpu_custom_call.1} parent=47 // pred_fallthru
          _
        // Predicated region
        $region65: #{tpu_custom_call.1} parent=47 // pred_check
          %p428 = pneg %p211
        $region66: #{tpu_custom_call.1} parent=47 // pred_check_branch
          %430 = sbr.rel (%p428) target = $region68
        $region67: #{tpu_custom_call.1} parent=47 // pred_region
          %431 = dma.done [#allocation15], 2048
        $region68: #{tpu_custom_call.1} parent=47 // pred_fallthru
          _
        %s432 = sand.u32 %s71, 1
        %s433 = scalar_lea.sflag [#allocation9], %s432
        %s434 = sand.u32 %s71, 1
        %s435 = smul.addr %s434, 32
        %s436 = scalar_lea.vmem [#allocation8], %s435
        %p437 = pneg %p84
        %p438 = pneg %p81
        %s439 = sand.u32 %s33, 1
        %s440 = scalar_lea.sflag [#allocation12], %s439
        %s441 = sand.u32 %s103, 1
        %s442 = smul.addr %s441, 32
        %s443 = scalar_lea.vmem [#allocation11], %s442
        %p444 = pneg %p116
        %p445 = pneg %p113
        %s446 = sand.u32 %s33, 1
        %s447 = scalar_lea.sflag [#allocation12], %s446
        %s448 = sand.u32 %s135, 1
        %s449 = smul.addr %s448, 32
        %s450 = scalar_lea.vmem [#allocation13], %s449
        %p451 = pneg %p148
        %p452 = pneg %p145
        %p453 = pneg %p169
        %p454 = pneg %p166
        %p455 = pneg %p190
        %p456 = pneg %p187
        %p457 = pneg %p211
        %p458 = pneg %p208
        %p459 = pneg %p232
        %p460 = pneg %p229
        %p461 = pneg %p262
        %p462 = pneg %p259
        %s463 = sand.u32 %s249, 1
        %s464 = scalar_lea.sflag [#allocation10], %s463
        %s465 = sand.u32 %s249, 1
        %s466 = smul.addr %s465, 32
        %s467 = scalar_lea.vmem [#allocation17], %s466
        %s468 = smul.u32 4, %s41
        %s469 = ssub.s32 1, %s39
        %s470 = smul.u32 4, %s42
        %s471 = ssub.s32 1, %s39
        %s472 = smul.u32 4, %s42
        %s473 = smul.u32 4, %s41
        %p474 = scmp.eq.s32.totalorder %s42, 0
        // Predicated region
        $region69: #{tpu_custom_call.1} parent=47 // pred_check
          %p475 = pneg %p474
        $region70: #{tpu_custom_call.1} parent=47 // pred_check_branch
          %477 = sbr.rel (%p475) target = $region72
        $region71: #{tpu_custom_call.1} parent=47 // pred_region
          %v478 = vld [vmem:[%s401] sm:$0xff]
          %v479 = vld [vmem:[%s401 + $0x8] sm:$0xff]
          %v480 = vld [vmem:[%s401 + $0x10] sm:$0xff]
          %v481 = vld [vmem:[%s401 + $0x18] sm:$0xff]
          %v482 = vld [vmem:[#allocation14] sm:$0xff]
          %v483 = vld [vmem:[#allocation14 + $0x8] sm:$0xff]
          %v484 = vld [vmem:[#allocation14 + $0x10] sm:$0xff]
          %v485 = vld [vmem:[#allocation14 + $0x18] sm:$0xff]
          %v486 = vld [vmem:[#allocation14 + $0x20] sm:$0xff]
          %v487 = vld [vmem:[#allocation14 + $0x28] sm:$0xff]
          %v488 = vld [vmem:[#allocation14 + $0x30] sm:$0xff]
          %v489 = vld [vmem:[#allocation14 + $0x38] sm:$0xff]
          %v490 = vld [vmem:[#allocation14 + $0x40] sm:$0xff]
          %v491 = vld [vmem:[#allocation14 + $0x48] sm:$0xff]
          %v492 = vld [vmem:[#allocation14 + $0x50] sm:$0xff]
          %v493 = vld [vmem:[#allocation14 + $0x58] sm:$0xff]
          %v494 = vld [vmem:[#allocation14 + $0x60] sm:$0xff]
          %v495 = vld [vmem:[#allocation14 + $0x68] sm:$0xff]
          %v496 = vld [vmem:[#allocation14 + $0x70] sm:$0xff]
          %v497 = vld [vmem:[#allocation14 + $0x78] sm:$0xff]
          %v498 = vld [vmem:[#allocation14 + $0x80] sm:$0xff]
          %v499 = vld [vmem:[#allocation14 + $0x88] sm:$0xff]
          %v500 = vld [vmem:[#allocation14 + $0x90] sm:$0xff]
          %v501 = vld [vmem:[#allocation14 + $0x98] sm:$0xff]
          %v502 = vld [vmem:[#allocation14 + $0xa0] sm:$0xff]
          %v503 = vld [vmem:[#allocation14 + $0xa8] sm:$0xff]
          %v504 = vld [vmem:[#allocation14 + $0xb0] sm:$0xff]
          %v505 = vld [vmem:[#allocation14 + $0xb8] sm:$0xff]
          %v506 = vld [vmem:[#allocation14 + $0xc0] sm:$0xff]
          %v507 = vld [vmem:[#allocation14 + $0xc8] sm:$0xff]
          %v508 = vld [vmem:[#allocation14 + $0xd0] sm:$0xff]
          %v509 = vld [vmem:[#allocation14 + $0xd8] sm:$0xff]
          %v510 = vld [vmem:[#allocation14 + $0xe0] sm:$0xff]
          %v511 = vld [vmem:[#allocation14 + $0xe8] sm:$0xff]
          %v512 = vld [vmem:[#allocation14 + $0xf0] sm:$0xff]
          %v513 = vld [vmem:[#allocation14 + $0xf8] sm:$0xff]
          %v514 = vld [vmem:[%s5] sm:$0x3]
          %v516 = vlaneseq
          %v517 = vshrl.u32 %v516, 7
          %v518 = vsub.s32 0, %v517
          %v519 = vrot.slane %v514, %v518
          %v520 = vlaneseq
          %v521 = vshrl.u32 %v520, 7
          %v522 = vsub.s32 1, %v521
          %v523 = vrot.slane %v514, %v522
          %526 = vmatprep.subr.mxu0 %v513
          %527 = vmatpush1.msra.mxu0 %v512
          %528 = vmatprep.subr.mxu0 %v511
          %529 = vmatpush1.msra.mxu0 %v510
          %530 = vmatprep.subr.mxu0 %v509
          %531 = vmatpush1.msra.mxu0 %v508
          %532 = vmatprep.subr.mxu0 %v507
          %533 = vmatpush1.msra.mxu0 %v506
          %534 = vmatprep.subr.mxu0 %v505
          %535 = vmatpush1.msra.mxu0 %v504
          %536 = vmatprep.subr.mxu0 %v503
          %537 = vmatpush1.msra.mxu0 %v502
          %538 = vmatprep.subr.mxu0 %v501
          %539 = vmatpush1.msra.mxu0 %v500
          %540 = vmatprep.subr.mxu0 %v499
          %541 = vmatpush1.msra.mxu0 %v498
          %542 = vmatprep.subr.mxu0 %v497
          %543 = vmatpush1.msra.mxu0 %v496
          %544 = vmatprep.subr.mxu0 %v495
          %545 = vmatpush1.msra.mxu0 %v494
          %546 = vmatprep.subr.mxu0 %v493
          %547 = vmatpush1.msra.mxu0 %v492
          %548 = vmatprep.subr.mxu0 %v491
          %549 = vmatpush1.msra.mxu0 %v490
          %550 = vmatprep.subr.mxu0 %v489
          %551 = vmatpush1.msra.mxu0 %v488
          %552 = vmatprep.subr.mxu0 %v487
          %553 = vmatpush1.msra.mxu0 %v486
          %554 = vmatprep.subr.mxu0 %v485
          %555 = vmatpush1.msra.mxu0 %v484
          %556 = vmatprep.subr.mxu0 %v483
          %557 = vmatpush1.msra.mxu0 %v482
          %558 = vmatprep.subr.mxu0 0.0
          %559 = vmatpush2.msra.mxu0 0.0
          %560 = vmatprep.subr.mxu0 0.0
          %561 = vmatpush2.msra.mxu0 0.0
          %562 = vmatprep.subr.mxu0 0.0
          %563 = vmatpush2.msra.mxu0 0.0
          %564 = vmatprep.subr.mxu0 0.0
          %565 = vmatpush2.msra.mxu0 0.0
          %566 = vmatprep.subr.mxu0 0.0
          %567 = vmatpush2.msra.mxu0 0.0
          %568 = vmatprep.subr.mxu0 0.0
          %569 = vmatpush2.msra.mxu0 0.0
          %570 = vmatprep.subr.mxu0 0.0
          %571 = vmatpush2.msra.mxu0 0.0
          %572 = vmatprep.subr.mxu0 0.0
          %573 = vmatpush2.msra.mxu0 0.0
          %574 = vmatprep.subr.mxu0 0.0
          %575 = vmatpush2.msra.mxu0 0.0
          %576 = vmatprep.subr.mxu0 0.0
          %577 = vmatpush2.msra.mxu0 0.0
          %578 = vmatprep.subr.mxu0 0.0
          %579 = vmatpush2.msra.mxu0 0.0
          %580 = vmatprep.subr.mxu0 0.0
          %581 = vmatpush2.msra.mxu0 0.0
          %582 = vmatprep.subr.mxu0 0.0
          %583 = vmatpush2.msra.mxu0 0.0
          %584 = vmatprep.subr.mxu0 0.0
          %585 = vmatpush2.msra.mxu0 0.0
          %586 = vmatprep.subr.mxu0 0.0
          %587 = vmatpush2.msra.mxu0 0.0
          %588 = vmatprep.subr.mxu0 0.0
          %589 = vmatpush2.msra.mxu0 0.0
          %590 = vmatprep.mubr.f32.mxu0 0.0
          %591 = vmatmul.mubr.f32.gmra.mxu0 %v478
          %v592 = vpop.f32.mrf.mxu0
          %v593 = vadd.f32 %v519, %v592
          %v594 = vpop.f32.mrf.mxu0
          %v595 = vadd.f32 %v523, %v594
          %596 = vmatprep.mubr.f32.mxu0 0.0
          %597 = vmatmul.mubr.f32.gmra.mxu0 %v479
          %v598 = vpop.f32.mrf.mxu0
          %v599 = vadd.f32 %v519, %v598
          %v600 = vpop.f32.mrf.mxu0
          %v601 = vadd.f32 %v523, %v600
          %602 = vmatprep.mubr.f32.mxu0 0.0
          %603 = vmatmul.mubr.f32.gmra.mxu0 %v480
          %v604 = vpop.f32.mrf.mxu0
          %v605 = vadd.f32 %v519, %v604
          %v606 = vpop.f32.mrf.mxu0
          %v607 = vadd.f32 %v523, %v606
          %608 = vmatprep.mubr.f32.mxu0 0.0
          %609 = vmatmul.mubr.f32.gmra.mxu0 %v481
          %v610 = vpop.f32.mrf.mxu0
          %v611 = vadd.f32 %v519, %v610
          %v612 = vpop.f32.mrf.mxu0
          %v613 = vadd.f32 %v523, %v612
          %614 = vdwg.mxu0
          %615 = vst [vmem:[#allocation2] sm:$0xff] %v593
          %616 = vst [vmem:[#allocation2 + $0x8] sm:$0xff] %v595
          %617 = vst [vmem:[#allocation2 + $0x10] sm:$0xff] %v599
          %618 = vst [vmem:[#allocation2 + $0x18] sm:$0xff] %v601
          %619 = vst [vmem:[#allocation2 + $0x20] sm:$0xff] %v605
          %620 = vst [vmem:[#allocation2 + $0x28] sm:$0xff] %v607
          %621 = vst [vmem:[#allocation2 + $0x30] sm:$0xff] %v611
          %622 = vst [vmem:[#allocation2 + $0x38] sm:$0xff] %v613
          %vm623 = vcmask 7168
          %624 = vst.msk [vmem:[#allocation3] sm:$0xff] %vm623, -1e+30
          %625 = vst.msk [vmem:[#allocation3 + $0x8] sm:$0xff] %vm623, -1e+30
          %626 = vst.msk [vmem:[#allocation3 + $0x10] sm:$0xff] %vm623, -1e+30
          %627 = vst.msk [vmem:[#allocation3 + $0x18] sm:$0xff] %vm623, -1e+30
          %628 = vst.msk [vmem:[#allocation4] sm:$0xff] %vm623, 0.0
          %629 = vst.msk [vmem:[#allocation4 + $0x8] sm:$0xff] %vm623, 0.0
          %630 = vst.msk [vmem:[#allocation4 + $0x10] sm:$0xff] %vm623, 0.0
          %631 = vst.msk [vmem:[#allocation4 + $0x18] sm:$0xff] %vm623, 0.0
          %632 = vst [vmem:[#allocation5] sm:$0xff] 0.0
          %633 = vst [vmem:[#allocation5 + $0x8] sm:$0xff] 0.0
          %634 = vst [vmem:[#allocation5 + $0x10] sm:$0xff] 0.0
          %635 = vst [vmem:[#allocation5 + $0x18] sm:$0xff] 0.0
        $region72: #{tpu_custom_call.1} parent=47 // pred_fallthru
          _
        %v636 = vld [vmem:[#allocation2] sm:$0xff]
        %v637 = vld [vmem:[#allocation2 + $0x10] sm:$0xff]
        %v638 = vld [vmem:[#allocation2 + $0x20] sm:$0xff]
        %v639 = vld [vmem:[#allocation2 + $0x30] sm:$0xff]
        %v640 = vld [vmem:[%s410] sm:$0xff]
        %v641 = vld [vmem:[%s410 + $0x8] sm:$0xff]
        %v642 = vld [vmem:[%s410 + $0x10] sm:$0xff]
        %v643 = vld [vmem:[%s410 + $0x18] sm:$0xff]
        %v644 = vld [vmem:[#allocation16] sm:$0xff]
        %v645 = vld [vmem:[#allocation16 + $0x8] sm:$0xff]
        %v646 = vld [vmem:[#allocation16 + $0x10] sm:$0xff]
        %v647 = vld [vmem:[#allocation16 + $0x18] sm:$0xff]
        %v648 = vld [vmem:[#allocation16 + $0x20] sm:$0xff]
        %v649 = vld [vmem:[#allocation16 + $0x28] sm:$0xff]
        %v650 = vld [vmem:[#allocation16 + $0x30] sm:$0xff]
        %v651 = vld [vmem:[#allocation16 + $0x38] sm:$0xff]
        %v652 = vld [vmem:[#allocation16 + $0x40] sm:$0xff]
        %v653 = vld [vmem:[#allocation16 + $0x48] sm:$0xff]
        %v654 = vld [vmem:[#allocation16 + $0x50] sm:$0xff]
        %v655 = vld [vmem:[#allocation16 + $0x58] sm:$0xff]
        %v656 = vld [vmem:[#allocation16 + $0x60] sm:$0xff]
        %v657 = vld [vmem:[#allocation16 + $0x68] sm:$0xff]
        %v658 = vld [vmem:[#allocation16 + $0x70] sm:$0xff]
        %v659 = vld [vmem:[#allocation16 + $0x78] sm:$0xff]
        %v660 = vld [vmem:[%s7] sm:$0x1]
        %v662 = vlaneseq
        %v663 = vshrl.u32 %v662, 7
        %v664 = vsub.s32 0, %v663
        %v665 = vrot.slane %v660, %v664
        %667 = vmatprep.subr.mxu0 0.0
        %668 = vmatpush1.msra.mxu0 %v659
        %669 = vmatprep.subr.mxu0 0.0
        %670 = vmatpush1.msra.mxu0 %v658
        %671 = vmatprep.subr.mxu0 0.0
        %672 = vmatpush1.msra.mxu0 %v657
        %673 = vmatprep.subr.mxu0 0.0
        %674 = vmatpush1.msra.mxu0 %v656
        %675 = vmatprep.subr.mxu0 0.0
        %676 = vmatpush1.msra.mxu0 %v655
        %677 = vmatprep.subr.mxu0 0.0
        %678 = vmatpush1.msra.mxu0 %v654
        %679 = vmatprep.subr.mxu0 0.0
        %680 = vmatpush1.msra.mxu0 %v653
        %681 = vmatprep.subr.mxu0 0.0
        %682 = vmatpush1.msra.mxu0 %v652
        %683 = vmatprep.subr.mxu0 0.0
        %684 = vmatpush1.msra.mxu0 %v651
        %685 = vmatprep.subr.mxu0 0.0
        %686 = vmatpush1.msra.mxu0 %v650
        %687 = vmatprep.subr.mxu0 0.0
        %688 = vmatpush1.msra.mxu0 %v649
        %689 = vmatprep.subr.mxu0 0.0
        %690 = vmatpush1.msra.mxu0 %v648
        %691 = vmatprep.subr.mxu0 0.0
        %692 = vmatpush1.msra.mxu0 %v647
        %693 = vmatprep.subr.mxu0 0.0
        %694 = vmatpush1.msra.mxu0 %v646
        %695 = vmatprep.subr.mxu0 0.0
        %696 = vmatpush1.msra.mxu0 %v645
        %697 = vmatprep.subr.mxu0 0.0
        %698 = vmatpush1.msra.mxu0 %v644
        %699 = vmatprep.subr.mxu0 0.0
        %700 = vmatpush2.msra.mxu0 0.0
        %701 = vmatprep.subr.mxu0 0.0
        %702 = vmatpush2.msra.mxu0 0.0
        %703 = vmatprep.subr.mxu0 0.0
        %704 = vmatpush2.msra.mxu0 0.0
        %705 = vmatprep.subr.mxu0 0.0
        %706 = vmatpush2.msra.mxu0 0.0
        %707 = vmatprep.subr.mxu0 0.0
        %708 = vmatpush2.msra.mxu0 0.0
        %709 = vmatprep.subr.mxu0 0.0
        %710 = vmatpush2.msra.mxu0 0.0
        %711 = vmatprep.subr.mxu0 0.0
        %712 = vmatpush2.msra.mxu0 0.0
        %713 = vmatprep.subr.mxu0 0.0
        %714 = vmatpush2.msra.mxu0 0.0
        %715 = vmatprep.subr.mxu0 0.0
        %716 = vmatpush2.msra.mxu0 0.0
        %717 = vmatprep.subr.mxu0 0.0
        %718 = vmatpush2.msra.mxu0 0.0
        %719 = vmatprep.subr.mxu0 0.0
        %720 = vmatpush2.msra.mxu0 0.0
        %721 = vmatprep.subr.mxu0 0.0
        %722 = vmatpush2.msra.mxu0 0.0
        %723 = vmatprep.subr.mxu0 0.0
        %724 = vmatpush2.msra.mxu0 0.0
        %725 = vmatprep.subr.mxu0 0.0
        %726 = vmatpush2.msra.mxu0 0.0
        %727 = vmatprep.subr.mxu0 0.0
        %728 = vmatpush2.msra.mxu0 0.0
        %729 = vmatprep.subr.mxu0 0.0
        %730 = vmatpush2.msra.mxu0 0.0
        %731 = vmatprep.mubr.f32.mxu0 0.0
        %732 = vmatmul.mubr.f32.gmra.mxu0 %v640
        %v733 = vpop.f32.mrf.mxu0
        %v734 = vadd.f32 %v665, %v733
        %v735 = vpop.f32.mrf.mxu0
        %736 = vmatprep.mubr.f32.mxu0 0.0
        %737 = vmatmul.mubr.f32.gmra.mxu0 %v641
        %v738 = vpop.f32.mrf.mxu0
        %v739 = vadd.f32 %v665, %v738
        %v740 = vpop.f32.mrf.mxu0
        %741 = vmatprep.mubr.f32.mxu0 0.0
        %742 = vmatmul.mubr.f32.gmra.mxu0 %v642
        %v743 = vpop.f32.mrf.mxu0
        %v744 = vadd.f32 %v665, %v743
        %v745 = vpop.f32.mrf.mxu0
        %746 = vmatprep.mubr.f32.mxu0 0.0
        %747 = vmatmul.mubr.f32.gmra.mxu0 %v643
        %v748 = vpop.f32.mrf.mxu0
        %v749 = vadd.f32 %v665, %v748
        %v750 = vpop.f32.mrf.mxu0
        %751 = vdwg.mxu0
        %s752 = sshra.s32 %s40, 7
        %s753 = sand.u32 %s40, 127
        %s754 = sadd.s32 %s752, %s39
        %s755 = smul.u32 %s754, 128
        %s756 = sshra.s32 %s40, 7
        %s757 = sand.u32 %s40, 127
        %s758 = sadd.s32 %s755, %s757
        %s759 = sld [smem:[#allocation7 + %s758]]
        %v760 = vlaneseq
        %v761 = vand.u32 %v760, 127
        %s762 = smul.u32 %s42, 32
        %v763 = vstv %s762
        %v764 = vadd.s32 %v761, %v763
        %v765 = vstv %s759
        %vm766 = vcmp.lt.s32.totalorder %v764, %v765
        %v767 = vsel %vm766, 0.0, -1e+30
        %768 = vmatprep.subr.mxu0 0.0
        %769 = vmatpush1.xpose.msra.mxu0 0.0
        %770 = vmatprep.subr.mxu0 0.0
        %771 = vmatpush1.xpose.msra.mxu0 0.0
        %772 = vmatprep.subr.mxu0 0.0
        %773 = vmatpush1.xpose.msra.mxu0 0.0
        %774 = vmatprep.subr.mxu0 0.0
        %775 = vmatpush1.xpose.msra.mxu0 0.0
        %776 = vmatprep.subr.mxu0 0.0
        %777 = vmatpush1.xpose.msra.mxu0 0.0
        %778 = vmatprep.subr.mxu0 0.0
        %779 = vmatpush1.xpose.msra.mxu0 0.0
        %780 = vmatprep.subr.mxu0 0.0
        %781 = vmatpush1.xpose.msra.mxu0 0.0
        %782 = vmatprep.subr.mxu0 0.0
        %783 = vmatpush1.xpose.msra.mxu0 0.0
        %784 = vmatprep.subr.mxu0 0.0
        %785 = vmatpush1.xpose.msra.mxu0 0.0
        %786 = vmatprep.subr.mxu0 0.0
        %787 = vmatpush1.xpose.msra.mxu0 0.0
        %788 = vmatprep.subr.mxu0 0.0
        %789 = vmatpush1.xpose.msra.mxu0 0.0
        %790 = vmatprep.subr.mxu0 0.0
        %791 = vmatpush1.xpose.msra.mxu0 0.0
        %792 = vmatprep.subr.mxu0 0.0
        %793 = vmatpush1.xpose.msra.mxu0 %v749
        %794 = vmatprep.subr.mxu0 0.0
        %795 = vmatpush1.xpose.msra.mxu0 %v744
        %796 = vmatprep.subr.mxu0 0.0
        %797 = vmatpush1.xpose.msra.mxu0 %v739
        %798 = vmatprep.subr.mxu0 0.0
        %799 = vmatpush1.xpose.msra.mxu0 %v734
        %800 = vmatprep.subr.mxu0 0.0
        %801 = vmatpush2.xpose.msra.mxu0 0.0
        %802 = vmatprep.subr.mxu0 0.0
        %803 = vmatpush2.xpose.msra.mxu0 0.0
        %804 = vmatprep.subr.mxu0 0.0
        %805 = vmatpush2.xpose.msra.mxu0 0.0
        %806 = vmatprep.subr.mxu0 0.0
        %807 = vmatpush2.xpose.msra.mxu0 0.0
        %808 = vmatprep.subr.mxu0 0.0
        %809 = vmatpush2.xpose.msra.mxu0 0.0
        %810 = vmatprep.subr.mxu0 0.0
        %811 = vmatpush2.xpose.msra.mxu0 0.0
        %812 = vmatprep.subr.mxu0 0.0
        %813 = vmatpush2.xpose.msra.mxu0 0.0
        %814 = vmatprep.subr.mxu0 0.0
        %815 = vmatpush2.xpose.msra.mxu0 0.0
        %816 = vmatprep.subr.mxu0 0.0
        %817 = vmatpush2.xpose.msra.mxu0 0.0
        %818 = vmatprep.subr.mxu0 0.0
        %819 = vmatpush2.xpose.msra.mxu0 0.0
        %820 = vmatprep.subr.mxu0 0.0
        %821 = vmatpush2.xpose.msra.mxu0 0.0
        %822 = vmatprep.subr.mxu0 0.0
        %823 = vmatpush2.xpose.msra.mxu0 0.0
        %824 = vmatprep.subr.mxu0 0.0
        %825 = vmatpush2.xpose.msra.mxu0 0.0
        %826 = vmatprep.subr.mxu0 0.0
        %827 = vmatpush2.xpose.msra.mxu0 0.0
        %828 = vmatprep.subr.mxu0 0.0
        %829 = vmatpush2.xpose.msra.mxu0 0.0
        %830 = vmatprep.subr.mxu0 0.0
        %831 = vmatpush2.xpose.msra.mxu0 0.0
        %832 = vmatprep.mubr.f32.mxu0 0.0
        %833 = vmatmul.mubr.f32.gmra.mxu0 %v636
        %v834 = vpop.f32.mrf.mxu0
        %v835 = vadd.f32 %v767, %v834
        %v836 = vpop.f32.mrf.mxu0
        %837 = vmatprep.mubr.f32.mxu0 0.0
        %838 = vmatmul.mubr.f32.gmra.mxu0 %v637
        %v839 = vpop.f32.mrf.mxu0
        %v840 = vadd.f32 %v767, %v839
        %v841 = vpop.f32.mrf.mxu0
        %842 = vmatprep.mubr.f32.mxu0 0.0
        %843 = vmatmul.mubr.f32.gmra.mxu0 %v638
        %v844 = vpop.f32.mrf.mxu0
        %v845 = vadd.f32 %v767, %v844
        %v846 = vpop.f32.mrf.mxu0
        %847 = vmatprep.mubr.f32.mxu0 0.0
        %848 = vmatmul.mubr.f32.gmra.mxu0 %v639
        %v849 = vpop.f32.mrf.mxu0
        %v850 = vadd.f32 %v767, %v849
        %v851 = vpop.f32.mrf.mxu0
        %852 = vdwg.mxu0
        %v853 = vld [vmem:[#allocation3] sm:$0xff]
        %v854 = vld [vmem:[#allocation3 + $0x8] sm:$0xff]
        %v855 = vld [vmem:[#allocation3 + $0x10] sm:$0xff]
        %v856 = vld [vmem:[#allocation3 + $0x18] sm:$0xff]
        %vm857 = vcmask 261120
        %v858 = vsel %vm857, %v835, -inf
        %859 = vmax.xlane.f32.xlu0 %v858
        %v860 = vpop.xlane.xlu0 %859
        %v861 = vsel %vm857, %v840, -inf
        %862 = vmax.xlane.f32.xlu0 %v861
        %v863 = vpop.xlane.xlu0 %862
        %v864 = vsel %vm857, %v845, -inf
        %865 = vmax.xlane.f32.xlu0 %v864
        %v866 = vpop.xlane.xlu0 %865
        %v867 = vsel %vm857, %v850, -inf
        %868 = vmax.xlane.f32.xlu0 %v867
        %v869 = vpop.xlane.xlu0 %868
        %v870 = vmax.f32 %v853, %v860
        %v871 = vmax.f32 %v854, %v863
        %v872 = vmax.f32 %v855, %v866
        %v873 = vmax.f32 %v856, %v869
        %v874 = vsub.f32 %v853, %v870
        %v875 = vsub.f32 %v854, %v871
        %v876 = vsub.f32 %v855, %v872
        %v877 = vsub.f32 %v856, %v873
        %v878 = vmul.f32 %v874, 1.442695
        %v879 = vpow.pop %v878
        %v880 = vmul.f32 %v875, 1.442695
        %v881 = vpow.pop %v880
        %v882 = vmul.f32 %v876, 1.442695
        %v883 = vpow.pop %v882
        %v884 = vmul.f32 %v877, 1.442695
        %v885 = vpow.pop %v884
        %887 = vset.pattern.permute.xlu0 0
        %888 = vperm.xlu0 %887, %v870
        %v889 = vpop.permute.xlu0 %888
        %892 = vset.pattern.permute.xlu0 0
        %893 = vperm.xlu0 %892, %v871
        %v894 = vpop.permute.xlu0 %893
        %897 = vset.pattern.permute.xlu0 0
        %898 = vperm.xlu0 %897, %v872
        %v899 = vpop.permute.xlu0 %898
        %902 = vset.pattern.permute.xlu0 0
        %903 = vperm.xlu0 %902, %v873
        %v904 = vpop.permute.xlu0 %903
        %v906 = vsub.f32 %v835, %v889
        %v907 = vsub.f32 %v840, %v894
        %v908 = vsub.f32 %v845, %v899
        %v909 = vsub.f32 %v850, %v904
        %v910 = vmul.f32 %v906, 1.442695
        %v911 = vpow.pop %v910
        %v912 = vmul.f32 %v907, 1.442695
        %v913 = vpow.pop %v912
        %v914 = vmul.f32 %v908, 1.442695
        %v915 = vpow.pop %v914
        %v916 = vmul.f32 %v909, 1.442695
        %v917 = vpow.pop %v916
        %v918 = vld [vmem:[#allocation4] sm:$0xff]
        %v919 = vld [vmem:[#allocation4 + $0x8] sm:$0xff]
        %v920 = vld [vmem:[#allocation4 + $0x10] sm:$0xff]
        %v921 = vld [vmem:[#allocation4 + $0x18] sm:$0xff]
        %v922 = vmul.f32 %v879, %v918
        %v923 = vmul.f32 %v881, %v919
        %v924 = vmul.f32 %v883, %v920
        %v925 = vmul.f32 %v885, %v921
        %v926 = vsel %vm857, %v911, 0.0
        %927 = vadd.xlane.f32.xlu0 %v926
        %v928 = vpop.xlane.xlu0 %927
        %v929 = vsel %vm857, %v913, 0.0
        %930 = vadd.xlane.f32.xlu0 %v929
        %v931 = vpop.xlane.xlu0 %930
        %v932 = vsel %vm857, %v915, 0.0
        %933 = vadd.xlane.f32.xlu0 %v932
        %v934 = vpop.xlane.xlu0 %933
        %v935 = vsel %vm857, %v917, 0.0
        %936 = vadd.xlane.f32.xlu0 %v935
        %v937 = vpop.xlane.xlu0 %936
        %v938 = vadd.f32 %v922, %v928
        %v939 = vadd.f32 %v923, %v931
        %v940 = vadd.f32 %v924, %v934
        %v941 = vadd.f32 %v925, %v937
        %vm942 = vcmask 7168
        %943 = vst.msk [vmem:[#allocation4] sm:$0xff] %vm942, %v938
        %944 = vst.msk [vmem:[#allocation4 + $0x8] sm:$0xff] %vm942, %v939
        %945 = vst.msk [vmem:[#allocation4 + $0x10] sm:$0xff] %vm942, %v940
        %946 = vst.msk [vmem:[#allocation4 + $0x18] sm:$0xff] %vm942, %v941
        %v947 = vld [vmem:[#allocation5] sm:$0xff]
        %v948 = vld [vmem:[#allocation5 + $0x8] sm:$0xff]
        %v949 = vld [vmem:[#allocation5 + $0x10] sm:$0xff]
        %v950 = vld [vmem:[#allocation5 + $0x18] sm:$0xff]
        %952 = vset.pattern.permute.xlu0 0
        %953 = vperm.xlu0 %952, %v879
        %v954 = vpop.permute.xlu0 %953
        %957 = vset.pattern.permute.xlu0 0
        %958 = vperm.xlu0 %957, %v881
        %v959 = vpop.permute.xlu0 %958
        %962 = vset.pattern.permute.xlu0 0
        %963 = vperm.xlu0 %962, %v883
        %v964 = vpop.permute.xlu0 %963
        %967 = vset.pattern.permute.xlu0 0
        %968 = vperm.xlu0 %967, %v885
        %v969 = vpop.permute.xlu0 %968
        %v971 = vmul.f32 %v954, %v947
        %v972 = vmul.f32 %v959, %v948
        %v973 = vmul.f32 %v964, %v949
        %v974 = vmul.f32 %v969, %v950
        %v975 = vld [vmem:[%s419] sm:$0xff]
        %v976 = vld [vmem:[%s419 + $0x8] sm:$0xff]
        %v977 = vld [vmem:[%s419 + $0x10] sm:$0xff]
        %v978 = vld [vmem:[%s419 + $0x18] sm:$0xff]
        %v980 = vsel %vm857, %v911, 0
        %v983 = vsel %vm857, %v913, 0
        %v986 = vsel %vm857, %v915, 0
        %v989 = vsel %vm857, %v917, 0
        %991 = vmatprep.subr.mxu0 0.0
        %992 = vmatpush1.msra.mxu0 0.0
        %993 = vmatprep.subr.mxu0 0.0
        %994 = vmatpush1.msra.mxu0 0.0
        %995 = vmatprep.subr.mxu0 0.0
        %996 = vmatpush1.msra.mxu0 0.0
        %997 = vmatprep.subr.mxu0 0.0
        %998 = vmatpush1.msra.mxu0 0.0
        %999 = vmatprep.subr.mxu0 0.0
        %1000 = vmatpush1.msra.mxu0 0.0
        %1001 = vmatprep.subr.mxu0 0.0
        %1002 = vmatpush1.msra.mxu0 0.0
        %1003 = vmatprep.subr.mxu0 0.0
        %1004 = vmatpush1.msra.mxu0 0.0
        %1005 = vmatprep.subr.mxu0 0.0
        %1006 = vmatpush1.msra.mxu0 0.0
        %1007 = vmatprep.subr.mxu0 0.0
        %1008 = vmatpush1.msra.mxu0 0.0
        %1009 = vmatprep.subr.mxu0 0.0
        %1010 = vmatpush1.msra.mxu0 0.0
        %1011 = vmatprep.subr.mxu0 0.0
        %1012 = vmatpush1.msra.mxu0 0.0
        %1013 = vmatprep.subr.mxu0 0.0
        %1014 = vmatpush1.msra.mxu0 0.0
        %1015 = vmatprep.subr.mxu0 0.0
        %1016 = vmatpush1.msra.mxu0 %v978
        %1017 = vmatprep.subr.mxu0 0.0
        %1018 = vmatpush1.msra.mxu0 %v977
        %1019 = vmatprep.subr.mxu0 0.0
        %1020 = vmatpush1.msra.mxu0 %v976
        %1021 = vmatprep.subr.mxu0 0.0
        %1022 = vmatpush1.msra.mxu0 %v975
        %1023 = vmatprep.subr.mxu0 0.0
        %1024 = vmatpush2.msra.mxu0 0.0
        %1025 = vmatprep.subr.mxu0 0.0
        %1026 = vmatpush2.msra.mxu0 0.0
        %1027 = vmatprep.subr.mxu0 0.0
        %1028 = vmatpush2.msra.mxu0 0.0
        %1029 = vmatprep.subr.mxu0 0.0
        %1030 = vmatpush2.msra.mxu0 0.0
        %1031 = vmatprep.subr.mxu0 0.0
        %1032 = vmatpush2.msra.mxu0 0.0
        %1033 = vmatprep.subr.mxu0 0.0
        %1034 = vmatpush2.msra.mxu0 0.0
        %1035 = vmatprep.subr.mxu0 0.0
        %1036 = vmatpush2.msra.mxu0 0.0
        %1037 = vmatprep.subr.mxu0 0.0
        %1038 = vmatpush2.msra.mxu0 0.0
        %1039 = vmatprep.subr.mxu0 0.0
        %1040 = vmatpush2.msra.mxu0 0.0
        %1041 = vmatprep.subr.mxu0 0.0
        %1042 = vmatpush2.msra.mxu0 0.0
        %1043 = vmatprep.subr.mxu0 0.0
        %1044 = vmatpush2.msra.mxu0 0.0
        %1045 = vmatprep.subr.mxu0 0.0
        %1046 = vmatpush2.msra.mxu0 0.0
        %1047 = vmatprep.subr.mxu0 0.0
        %1048 = vmatpush2.msra.mxu0 0.0
        %1049 = vmatprep.subr.mxu0 0.0
        %1050 = vmatpush2.msra.mxu0 0.0
        %1051 = vmatprep.subr.mxu0 0.0
        %1052 = vmatpush2.msra.mxu0 0.0
        %1053 = vmatprep.subr.mxu0 0.0
        %1054 = vmatpush2.msra.mxu0 0.0
        %1055 = vmatprep.mubr.f32.mxu0 0.0
        %1056 = vmatmul.mubr.f32.gmra.mxu0 %v980
        %v1057 = vpop.f32.mrf.mxu0
        %v1058 = vadd.f32 0.0, %v1057
        %v1059 = vpop.f32.mrf.mxu0
        %1060 = vmatprep.mubr.f32.mxu0 0.0
        %1061 = vmatmul.mubr.f32.gmra.mxu0 %v983
        %v1062 = vpop.f32.mrf.mxu0
        %v1063 = vadd.f32 0.0, %v1062
        %v1064 = vpop.f32.mrf.mxu0
        %1065 = vmatprep.mubr.f32.mxu0 0.0
        %1066 = vmatmul.mubr.f32.gmra.mxu0 %v986
        %v1067 = vpop.f32.mrf.mxu0
        %v1068 = vadd.f32 0.0, %v1067
        %v1069 = vpop.f32.mrf.mxu0
        %1070 = vmatprep.mubr.f32.mxu0 0.0
        %1071 = vmatmul.mubr.f32.gmra.mxu0 %v989
        %v1072 = vpop.f32.mrf.mxu0
        %v1073 = vadd.f32 0.0, %v1072
        %v1074 = vpop.f32.mrf.mxu0
        %1075 = vdwg.mxu0
        %v1076 = vadd.f32 %v971, %v1058
        %v1077 = vadd.f32 %v972, %v1063
        %v1078 = vadd.f32 %v973, %v1068
        %v1079 = vadd.f32 %v974, %v1073
        %1080 = vst [vmem:[#allocation5] sm:$0xff] %v1076
        %1081 = vst [vmem:[#allocation5 + $0x8] sm:$0xff] %v1077
        %1082 = vst [vmem:[#allocation5 + $0x10] sm:$0xff] %v1078
        %1083 = vst [vmem:[#allocation5 + $0x18] sm:$0xff] %v1079
        %1084 = vst.msk [vmem:[#allocation3] sm:$0xff] %vm942, %v870
        %1085 = vst.msk [vmem:[#allocation3 + $0x8] sm:$0xff] %vm942, %v871
        %1086 = vst.msk [vmem:[#allocation3 + $0x10] sm:$0xff] %vm942, %v872
        %1087 = vst.msk [vmem:[#allocation3 + $0x18] sm:$0xff] %vm942, %v873
        %p1088 = scmp.eq.s32.totalorder %s42, 2
        // Predicated region
        $region73: #{tpu_custom_call.1} parent=47 // pred_check
          %p1089 = pneg %p1088
        $region74: #{tpu_custom_call.1} parent=47 // pred_check_branch
          %1091 = sbr.rel (%p1089) target = $region76
        $region75: #{tpu_custom_call.1} parent=47 // pred_region
          %v1092 = vld [vmem:[#allocation4] sm:$0xff]
          %v1093 = vld [vmem:[#allocation4 + $0x8] sm:$0xff]
          %v1094 = vld [vmem:[#allocation4 + $0x10] sm:$0xff]
          %v1095 = vld [vmem:[#allocation4 + $0x18] sm:$0xff]
          %v1096 = vrcp.pop %v1092
          %v1097 = vrcp.pop %v1093
          %v1098 = vrcp.pop %v1094
          %v1099 = vrcp.pop %v1095
          %v1100 = vld [vmem:[#allocation5] sm:$0xff]
          %v1101 = vld [vmem:[#allocation5 + $0x8] sm:$0xff]
          %v1102 = vld [vmem:[#allocation5 + $0x10] sm:$0xff]
          %v1103 = vld [vmem:[#allocation5 + $0x18] sm:$0xff]
          %1105 = vset.pattern.permute.xlu0 0
          %1106 = vperm.xlu0 %1105, %v1096
          %v1107 = vpop.permute.xlu0 %1106
          %1110 = vset.pattern.permute.xlu0 0
          %1111 = vperm.xlu0 %1110, %v1097
          %v1112 = vpop.permute.xlu0 %1111
          %1115 = vset.pattern.permute.xlu0 0
          %1116 = vperm.xlu0 %1115, %v1098
          %v1117 = vpop.permute.xlu0 %1116
          %1120 = vset.pattern.permute.xlu0 0
          %1121 = vperm.xlu0 %1120, %v1099
          %v1122 = vpop.permute.xlu0 %1121
          %v1124 = vmul.f32 %v1100, %v1107
          %v1125 = vmul.f32 %v1101, %v1112
          %v1126 = vmul.f32 %v1102, %v1117
          %v1127 = vmul.f32 %v1103, %v1122
          %v1128 = vld [vmem:[#allocation2 + $0x8] sm:$0xff]
          %v1129 = vld [vmem:[#allocation2 + $0x18] sm:$0xff]
          %v1130 = vld [vmem:[#allocation2 + $0x28] sm:$0xff]
          %v1131 = vld [vmem:[#allocation2 + $0x38] sm:$0xff]
          %v1132 = vadd.f32 %v1124, %v1128
          %v1133 = vadd.f32 %v1125, %v1129
          %v1134 = vadd.f32 %v1126, %v1130
          %v1135 = vadd.f32 %v1127, %v1131
          %1136 = vst [vmem:[%s467] sm:$0xff] %v1132
          %1137 = vst [vmem:[%s467 + $0x8] sm:$0xff] %v1133
          %1138 = vst [vmem:[%s467 + $0x10] sm:$0xff] %v1134
          %1139 = vst [vmem:[%s467 + $0x18] sm:$0xff] %v1135
        $region76: #{tpu_custom_call.1} parent=47 // pred_fallthru
          _
        %s1140 = sand.u32 %s249, 1
        %s1141 = scalar_lea.sflag [#allocation10], %s1140
        %s1142 = sand.u32 %s249, 1
        %s1143 = smul.addr %s1142, 32
        %s1144 = scalar_lea.vmem [#allocation17], %s1143
        // Predicated region
        $region77: #{tpu_custom_call.1} parent=47 // pred_check
          %p1145 = pneg %p259
        $region78: #{tpu_custom_call.1} parent=47 // pred_check_branch
          %1147 = sbr.rel (%p1145) target = $region80
        $region79: #{tpu_custom_call.1} parent=47 // pred_region
          %s1148 = smul.u32 4, %s41
          %s1150 = ssub.s32 512, 512
          %1151 = vsyncadd %s1141, %s1150
          %s1152 = smul.addr %s40, 12
          %s1153 = sadd.s32 %s1148, %s1152
          %s1154 = smul.addr %s39, 24
          %s1155 = sadd.s32 %s1153, %s1154
          %s1156 = smul.addr %s1155, 128
          %s1157 = scalar_lea.hbm %s8, %s1156
          %s1158 = sshll.u32 %s1144, 4
          %s1159 = int_to_ptr.vmem [resolvable:$true] %s1158
          %1164 = dma.vmem_to_hbm [thread:$0]  %s1159, 512, %s1157, %s1141, 128, 128, 8
        $region80: #{tpu_custom_call.1} parent=47 // pred_fallthru
          _
      $region48: #{tpu_custom_call.1} parent=5 // pred_fallthru
        _
      %p1165 = scmp.le.s32.totalorder 2, %s28
      // Predicated region
      $region81: #{tpu_custom_call.1} parent=5 // pred_check
        %p1166 = pneg %p1165
      $region82: #{tpu_custom_call.1} parent=5 // pred_check_branch
        %1168 = sbr.rel (%p1166) target = $region84
      $region83: #{tpu_custom_call.1} parent=5 // pred_region
        %s1169 = ssub.s32 %s28, 2
        // Predicated region
        $region85: #{tpu_custom_call.1} parent=83 // pred_check
          %p1170 = pneg %p265
        $region86: #{tpu_custom_call.1} parent=83 // pred_check_branch
          %1172 = sbr.rel (%p1170) target = $region88
        $region87: #{tpu_custom_call.1} parent=83 // pred_region
          %s1173 = sand.u32 %s250, 1
          %s1174 = scalar_lea.sflag [#allocation10], %s1173
          %s1175 = sand.u32 %s250, 1
          %s1176 = smul.addr %s1175, 32
          %s1177 = scalar_lea.vmem [#allocation17], %s1176
          %1178 = dma.done %s1174, 512
        $region88: #{tpu_custom_call.1} parent=83 // pred_fallthru
          _
      $region84: #{tpu_custom_call.1} parent=5 // pred_fallthru
        _
    $region6: #{tpu_custom_call.1} parent=1 // loop_footer
      %s32 = sadd.s32 1, %s28
    $region7: #{tpu_custom_call.1} parent=1 // loop_footer_branch
      %27 = sbr.rel target = $region3
    $region8: #{tpu_custom_call.1} parent=1 // loop_exit
      _
    %1179 = vsyncpa [#allocation9], 1
    %s1180 = scalar_lea.sflag [#allocation9], 1
    %1181 = vsyncpa %s1180, 1
    %1182 = vsyncpa [#allocation12], 1
    %s1183 = scalar_lea.sflag [#allocation12], 1
    %1184 = vsyncpa %s1183, 1
    %1185 = vsyncpa [#allocation15], 1
    %1186 = vsyncpa [#allocation10], 1
    %s1187 = scalar_lea.sflag [#allocation10], 1
    %1188 = vsyncpa %s1187, 1

</llo_original>
